<compile_context>
chip_gen: v7x
topology: tpu7x:2x2x1
jax: 0.10.0
libtpu: 0.0.40
codegen_flags: <defaults>
</compile_context>

<pallas_src>
import functools

import jax
import jax.numpy as jnp
import numpy as np
from jax import lax
from jax.experimental import pallas as pl
from jax.experimental.pallas import tpu as pltpu


def _basic_block_kernel(x_ref, m_ref, w1_ref, b1_ref, w2_ref, b2_ref, o_ref,
                        *, W, HW, Nb, im2col_bf16):
    L = Nb * HW

    # ---- widen the MXU N dim: lane-concat the Nb images into (Cin, Nb*HW) ----
    if Nb == 1:
        x = x_ref[0]                                         # (Cin, HW) f32
    else:
        x = jnp.concatenate([x_ref[i] for i in range(Nb)], axis=1)   # (Cin, L)

    # ---- conv1 (1x1, BN1 scale folded into w1): one MXU matmul, bf16 ops ----
    h1 = jnp.dot(w1_ref[...], x.astype(jnp.bfloat16),
                 preferred_element_type=jnp.float32)         # (C1, L) f32
    h1 = h1 + b1_ref[...]                                    # BN1 shift
    h1 = jnp.maximum(h1, 0.1 * h1)                           # LeakyReLU(0.1)

    # dtype used for the 9 rolls / masks (bf16 on v6e/v7x halves im2col traffic;
    # keep f32 on v5e — no native bf16 VPU path there).
    h1s = h1.astype(jnp.bfloat16) if im2col_bf16 else h1

    masks = m_ref[...]                                       # (8, L) 0/1

    # ---- conv2 (3x3 / pad=1) as 9 accumulating matmuls ----
    # window(dy,dx)[c, p] = h1[c, p + dy*W + dx] when the shifted pixel lies
    # inside the same image, else 0 (SAME padding).  Each window is consumed
    # immediately — no materialized (9*C1, HW) im2col buffer.
    taps = [(dy, dx) for dy in (-1, 0, 1) for dx in (-1, 0, 1)]
    h2 = jnp.dot(w2_ref[4], h1s.astype(jnp.bfloat16),        # center tap (0,0)
                 preferred_element_type=jnp.float32)         # (C2, L) f32
    mi = 0
    for k, (dy, dx) in enumerate(taps):
        if dy == 0 and dx == 0:
            continue
        shift = (-(dy * W + dx)) % L                         # non-negative, static
        win = pltpu.roll(h1s, shift=shift, axis=1)           # XLU lane rotate
        win = win * masks[mi:mi + 1, :]                      # zero padded pixels
        h2 = h2 + jnp.dot(w2_ref[k], win.astype(jnp.bfloat16),
                          preferred_element_type=jnp.float32)
        mi += 1

    h2 = h2 + b2_ref[...]                                    # BN2 shift
    h2 = jnp.maximum(h2, 0.1 * h2)                           # LeakyReLU(0.1)

    # ---- residual add (f32) + lane-dense store, one image at a time ----
    out = (h2 + x).astype(o_ref.dtype)                       # (C2, L)
    for i in range(Nb):
        o_ref[i] = out[:, i * HW:(i + 1) * HW]


def basic_block_pallas(x_nchw, w1_hwio, w2_hwio, bn1, bn2, eps=1e-5,
                       images_per_block=None, im2col_bf16=False):
    """x_nchw: (N, Cin, H, W). w1_hwio: (1,1,Cin,C1). w2_hwio: (3,3,C1,C2).
    bn*: dict(gamma, beta, mean, var) per-channel vectors (inference BN)."""
    N, Cin, H, W = x_nchw.shape
    C1 = w1_hwio.shape[-1]
    C2 = w2_hwio.shape[-1]
    assert C2 == Cin, "residual add requires planes[1] == inplanes"
    HW = H * W

    # Fold several images into the lane/N axis when spatial size is small, so
    # the MXU sees a wide N and per-grid-step overhead is amortized.  (On v7x,
    # prefer an even grid extent so both TensorCores stay busy.)
    if images_per_block is None:
        cap = max(1, 16384 // HW)
        nb = min(N, cap)
        while N % nb:
            nb -= 1
        images_per_block = nb
    Nb = images_per_block
    assert N % Nb == 0
    L = Nb * HW

    # Fold BN (inference form): scale goes into the conv weights, shift stays.
    s1 = bn1["gamma"] / jnp.sqrt(bn1["var"] + eps)                   # (C1,)
    b1 = (bn1["beta"] - bn1["mean"] * s1).reshape(C1, 1).astype(jnp.float32)
    s2 = bn2["gamma"] / jnp.sqrt(bn2["var"] + eps)                   # (C2,)
    b2 = (bn2["beta"] - bn2["mean"] * s2).reshape(C2, 1).astype(jnp.float32)

    w1 = (w1_hwio.reshape(Cin, C1) * s1[None, :]).T.astype(jnp.bfloat16)  # (C1, Cin)
    # Per-tap conv2 weights: tap k = (ky*3 + kx), same order as the kernel loop.
    w2_taps = jnp.transpose((w2_hwio * s2).reshape(9, C1, C2),
                            (0, 2, 1)).astype(jnp.bfloat16)               # (9, C2, C1)

    # Precomputed SAME-padding boundary masks for the 8 non-center taps, tiled
    # per image across the folded lane axis (no in-kernel div/mod by W).
    xs = np.arange(HW) % W
    ys = np.arange(HW) // W
    mlist = []
    for dy in (-1, 0, 1):
        for dx in (-1, 0, 1):
            if dy == 0 and dx == 0:
                continue
            m = np.ones(HW, dtype=np.float32)
            if dx == -1:
                m *= (xs >= 1)
            if dx == 1:
                m *= (xs <= W - 2)
            if dy == -1:
                m *= (ys >= 1)
            if dy == 1:
                m *= (ys <= H - 2)
            mlist.append(m)
    mask_dtype = jnp.bfloat16 if im2col_bf16 else jnp.float32
    masks = jnp.asarray(np.tile(np.stack(mlist), (1, Nb)), dtype=mask_dtype)  # (8, L)

    # Free reshape: channels -> sublanes, flattened H*W -> lanes. No transpose.
    x_flat = x_nchw.reshape(N, Cin, HW)

    kernel = functools.partial(_basic_block_kernel, W=W, HW=HW, Nb=Nb,
                               im2col_bf16=im2col_bf16)

    out = pl.pallas_call(
        kernel,
        out_shape=jax.ShapeDtypeStruct((N, C2, HW), x_nchw.dtype),
        grid_spec=pltpu.PrefetchScalarGridSpec(
            num_scalar_prefetch=0,
            grid=(N // Nb,),
            in_specs=[
                pl.BlockSpec((Nb, Cin, HW), lambda n: (n, 0, 0)),   # x
                pl.BlockSpec((8, L), lambda n: (0, 0)),             # edge masks
                pl.BlockSpec((C1, Cin), lambda n: (0, 0)),          # w1 (BN1-scaled)
                pl.BlockSpec((C1, 1), lambda n: (0, 0)),            # bn1 shift
                pl.BlockSpec((9, C2, C1), lambda n: (0, 0, 0)),     # w2 taps (BN2-scaled)
                pl.BlockSpec((C2, 1), lambda n: (0, 0)),            # bn2 shift
            ],
            out_specs=pl.BlockSpec((Nb, C2, HW), lambda n: (n, 0, 0)),
        ),
        compiler_params=pltpu.CompilerParams(
            dimension_semantics=("parallel",),
            vmem_limit_bytes=64 * 1024 * 1024),
    )(x_flat, masks, w1, b1, w2_taps, b2)

    return out.reshape(N, C2, H, W)


def basic_block_reference(x_nchw, w1_hwio, w2_hwio, bn1, bn2, eps=1e-5):
    """Pure-JAX f32 reference (NHWC convs), for correctness checking."""
    x = jnp.transpose(x_nchw, (0, 2, 3, 1))
    dn = ("NHWC", "HWIO", "NHWC")

    def bn(h, p):
        s = p["gamma"] / jnp.sqrt(p["var"] + eps)
        return h * s + (p["beta"] - p["mean"] * s)

    def lrelu(h):
        return jnp.where(h > 0, h, 0.1 * h)

    h = lax.conv_general_dilated(x, w1_hwio, (1, 1), "VALID", dimension_numbers=dn)
    h = lrelu(bn(h, bn1))
    h = lax.conv_general_dilated(h, w2_hwio, (1, 1), "SAME", dimension_numbers=dn)
    h = lrelu(bn(h, bn2))
    return jnp.transpose(h + x, (0, 3, 1, 2))


if __name__ == "__main__":
    # BasicBlock(inplanes=4, planes=[8, 4]); input (N=2, C=4, H=16, W=16)
    N, Cin, H, W = 2, 4, 16, 16
    C1, C2 = 8, 4

    key = jax.random.PRNGKey(0)
    k = jax.random.split(key, 8)

    x = jax.random.normal(k[0], (N, Cin, H, W), jnp.float32)
    w1 = 0.1 * jax.random.normal(k[1], (1, 1, Cin, C1), jnp.float32)   # HWIO
    w2 = 0.1 * jax.random.normal(k[2], (3, 3, C1, C2), jnp.float32)    # HWIO

    bn1 = dict(
        gamma=1.0 + 0.1 * jax.random.normal(k[3], (C1,), jnp.float32),
        beta=0.1 * jax.random.normal(k[4], (C1,), jnp.float32),
        mean=0.1 * jax.random.normal(k[5], (C1,), jnp.float32),
        var=jnp.abs(jax.random.normal(k[6], (C1,), jnp.float32)) + 0.5,
    )
    bn2 = dict(
        gamma=1.0 + 0.05 * jnp.arange(C2, dtype=jnp.float32),
        beta=0.02 * jnp.arange(C2, dtype=jnp.float32),
        mean=0.03 * jnp.arange(C2, dtype=jnp.float32),
        var=0.5 + 0.1 * jnp.arange(C2, dtype=jnp.float32),
    )

    out = basic_block_pallas(x, w1, w2, bn1, bn2)
    out = jax.block_until_ready(out)

    ref = basic_block_reference(x, w1, w2, bn1, bn2)
    # bf16 matmul operands (f32 accumulation) -> compare at bf16-appropriate
    # tolerance against the pure-f32 reference.
    np.testing.assert_allclose(np.asarray(out), np.asarray(ref),
                               rtol=2e-2, atol=2e-2)
    print("KERNEL_OK")
</pallas_src>

<mosaic_0001>
module attributes {stable_mosaic.version = 11 : i64} {
  func.func @_basic_block_kernel(%arg0: i32, %arg1: memref<2x4x256xf32, #tpu.memory_space<vmem>>, %arg2: memref<8x512xf32, #tpu.memory_space<vmem>>, %arg3: memref<8x4xbf16, #tpu.memory_space<vmem>>, %arg4: memref<8x1xf32, #tpu.memory_space<vmem>>, %arg5: memref<9x4x8xbf16, #tpu.memory_space<vmem>>, %arg6: memref<4x1xf32, #tpu.memory_space<vmem>>, %arg7: memref<2x4x256xf32, #tpu.memory_space<vmem>>) attributes {dimension_semantics = [#tpu.dimension_semantics<parallel>], iteration_bounds = array<i64: 1>, scalar_prefetch = 0 : i64, scratch_operands = 0 : i64, tpu.core_type = #tpu.core_type<tc>, window_params = [{transform_indices = @transform_0, window_bounds = array<i64: 2, 4, 256>}, {pipeline_mode = #tpu.pipeline_mode<synchronous>, transform_indices = @transform_1, window_bounds = array<i64: 8, 512>}, {pipeline_mode = #tpu.pipeline_mode<synchronous>, transform_indices = @transform_2, window_bounds = array<i64: 8, 4>}, {pipeline_mode = #tpu.pipeline_mode<synchronous>, transform_indices = @transform_3, window_bounds = array<i64: 8, 1>}, {pipeline_mode = #tpu.pipeline_mode<synchronous>, transform_indices = @transform_4, window_bounds = array<i64: 9, 4, 8>}, {pipeline_mode = #tpu.pipeline_mode<synchronous>, transform_indices = @transform_5, window_bounds = array<i64: 4, 1>}, {transform_indices = @transform_6, window_bounds = array<i64: 2, 4, 256>}]} {
    %c0 = arith.constant 0 : index
    %c0_0 = arith.constant 0 : index
    %c0_1 = arith.constant 0 : index
    %0 = vector.load %arg1[%c0, %c0_0, %c0_1] : memref<2x4x256xf32, #tpu.memory_space<vmem>>, vector<1x4x256xf32>
    %1 = vector.shape_cast %0 : vector<1x4x256xf32> to vector<4x256xf32>
    %c1 = arith.constant 1 : index
    %c0_2 = arith.constant 0 : index
    %c0_3 = arith.constant 0 : index
    %2 = vector.load %arg1[%c1, %c0_2, %c0_3] : memref<2x4x256xf32, #tpu.memory_space<vmem>>, vector<1x4x256xf32>
    %3 = vector.shape_cast %2 : vector<1x4x256xf32> to vector<4x256xf32>
    %4 = tpu.concatenate %1, %3 in 1 : vector<4x256xf32>, vector<4x256xf32> -> vector<4x512xf32>
    %c0_4 = arith.constant 0 : index
    %c0_5 = arith.constant 0 : index
    %5 = vector.load %arg3[%c0_4, %c0_5] : memref<8x4xbf16, #tpu.memory_space<vmem>>, vector<8x4xbf16>
    %6 = arith.truncf %4 : vector<4x512xf32> to vector<4x512xbf16>
    %cst = arith.constant dense<0.000000e+00> : vector<8x512xf32>
    %7 = tpu.matmul %5, %6, %cst {dimension_numbers = #tpu.dot_dimension_numbers<[1], [0], [0], [1], [0, 0, 1, 1], [], []>} : vector<8x4xbf16>, vector<4x512xbf16>, vector<8x512xf32> -> vector<8x512xf32>
    %c0_6 = arith.constant 0 : index
    %c0_7 = arith.constant 0 : index
    %8 = vector.load %arg4[%c0_6, %c0_7] : memref<8x1xf32, #tpu.memory_space<vmem>>, vector<8x1xf32>
    %9 = vector.broadcast %8 : vector<8x1xf32> to vector<8x512xf32>
    %10 = arith.addf %7, %9 : vector<8x512xf32>
    %cst_8 = arith.constant 1.000000e-01 : f32
    %11 = vector.broadcast %cst_8 : f32 to vector<8x512xf32>
    %12 = arith.mulf %11, %10 : vector<8x512xf32>
    %13 = arith.maximumf %10, %12 : vector<8x512xf32>
    %c0_9 = arith.constant 0 : index
    %c0_10 = arith.constant 0 : index
    %14 = vector.load %arg2[%c0_9, %c0_10] : memref<8x512xf32, #tpu.memory_space<vmem>>, vector<8x512xf32>
    %c4 = arith.constant 4 : index
    %c0_11 = arith.constant 0 : index
    %c0_12 = arith.constant 0 : index
    %15 = vector.load %arg5[%c4, %c0_11, %c0_12] : memref<9x4x8xbf16, #tpu.memory_space<vmem>>, vector<1x4x8xbf16>
    %16 = vector.shape_cast %15 : vector<1x4x8xbf16> to vector<4x8xbf16>
    %17 = arith.truncf %13 : vector<8x512xf32> to vector<8x512xbf16>
    %cst_13 = arith.constant dense<0.000000e+00> : vector<4x512xf32>
    %18 = tpu.matmul %16, %17, %cst_13 {dimension_numbers = #tpu.dot_dimension_numbers<[1], [0], [0], [1], [0, 0, 1, 1], [], []>} : vector<4x8xbf16>, vector<8x512xbf16>, vector<4x512xf32> -> vector<4x512xf32>
    %c17_i32 = arith.constant 17 : i32
    %19 = tpu.dynamic_rotate %13 by %c17_i32 dim 1 : vector<8x512xf32>, i32 -> vector<8x512xf32>
    %20 = vector.extract_strided_slice %14 {offsets = [0, 0], sizes = [1, 512], strides = [1, 1]} : vector<8x512xf32> to vector<1x512xf32>
    %21 = vector.broadcast %20 : vector<1x512xf32> to vector<8x512xf32>
    %22 = arith.mulf %19, %21 : vector<8x512xf32>
    %c0_14 = arith.constant 0 : index
    %c0_15 = arith.constant 0 : index
    %c0_16 = arith.constant 0 : index
    %23 = vector.load %arg5[%c0_14, %c0_15, %c0_16] : memref<9x4x8xbf16, #tpu.memory_space<vmem>>, vector<1x4x8xbf16>
    %24 = vector.shape_cast %23 : vector<1x4x8xbf16> to vector<4x8xbf16>
    %25 = arith.truncf %22 : vector<8x512xf32> to vector<8x512xbf16>
    %cst_17 = arith.constant dense<0.000000e+00> : vector<4x512xf32>
    %26 = tpu.matmul %24, %25, %cst_17 {dimension_numbers = #tpu.dot_dimension_numbers<[1], [0], [0], [1], [0, 0, 1, 1], [], []>} : vector<4x8xbf16>, vector<8x512xbf16>, vector<4x512xf32> -> vector<4x512xf32>
    %27 = arith.addf %18, %26 : vector<4x512xf32>
    %c16_i32 = arith.constant 16 : i32
    %28 = tpu.dynamic_rotate %13 by %c16_i32 dim 1 : vector<8x512xf32>, i32 -> vector<8x512xf32>
    %29 = vector.extract_strided_slice %14 {offsets = [1, 0], sizes = [1, 512], strides = [1, 1]} : vector<8x512xf32> to vector<1x512xf32>
    %30 = vector.broadcast %29 : vector<1x512xf32> to vector<8x512xf32>
    %31 = arith.mulf %28, %30 : vector<8x512xf32>
    %c1_18 = arith.constant 1 : index
    %c0_19 = arith.constant 0 : index
    %c0_20 = arith.constant 0 : index
    %32 = vector.load %arg5[%c1_18, %c0_19, %c0_20] : memref<9x4x8xbf16, #tpu.memory_space<vmem>>, vector<1x4x8xbf16>
    %33 = vector.shape_cast %32 : vector<1x4x8xbf16> to vector<4x8xbf16>
    %34 = arith.truncf %31 : vector<8x512xf32> to vector<8x512xbf16>
    %cst_21 = arith.constant dense<0.000000e+00> : vector<4x512xf32>
    %35 = tpu.matmul %33, %34, %cst_21 {dimension_numbers = #tpu.dot_dimension_numbers<[1], [0], [0], [1], [0, 0, 1, 1], [], []>} : vector<4x8xbf16>, vector<8x512xbf16>, vector<4x512xf32> -> vector<4x512xf32>
    %36 = arith.addf %27, %35 : vector<4x512xf32>
    %c15_i32 = arith.constant 15 : i32
    %37 = tpu.dynamic_rotate %13 by %c15_i32 dim 1 : vector<8x512xf32>, i32 -> vector<8x512xf32>
    %38 = vector.extract_strided_slice %14 {offsets = [2, 0], sizes = [1, 512], strides = [1, 1]} : vector<8x512xf32> to vector<1x512xf32>
    %39 = vector.broadcast %38 : vector<1x512xf32> to vector<8x512xf32>
    %40 = arith.mulf %37, %39 : vector<8x512xf32>
    %c2 = arith.constant 2 : index
    %c0_22 = arith.constant 0 : index
    %c0_23 = arith.constant 0 : index
    %41 = vector.load %arg5[%c2, %c0_22, %c0_23] : memref<9x4x8xbf16, #tpu.memory_space<vmem>>, vector<1x4x8xbf16>
    %42 = vector.shape_cast %41 : vector<1x4x8xbf16> to vector<4x8xbf16>
    %43 = arith.truncf %40 : vector<8x512xf32> to vector<8x512xbf16>
    %cst_24 = arith.constant dense<0.000000e+00> : vector<4x512xf32>
    %44 = tpu.matmul %42, %43, %cst_24 {dimension_numbers = #tpu.dot_dimension_numbers<[1], [0], [0], [1], [0, 0, 1, 1], [], []>} : vector<4x8xbf16>, vector<8x512xbf16>, vector<4x512xf32> -> vector<4x512xf32>
    %45 = arith.addf %36, %44 : vector<4x512xf32>
    %c1_i32 = arith.constant 1 : i32
    %46 = tpu.dynamic_rotate %13 by %c1_i32 dim 1 : vector<8x512xf32>, i32 -> vector<8x512xf32>
    %47 = vector.extract_strided_slice %14 {offsets = [3, 0], sizes = [1, 512], strides = [1, 1]} : vector<8x512xf32> to vector<1x512xf32>
    %48 = vector.broadcast %47 : vector<1x512xf32> to vector<8x512xf32>
    %49 = arith.mulf %46, %48 : vector<8x512xf32>
    %c3 = arith.constant 3 : index
    %c0_25 = arith.constant 0 : index
    %c0_26 = arith.constant 0 : index
    %50 = vector.load %arg5[%c3, %c0_25, %c0_26] : memref<9x4x8xbf16, #tpu.memory_space<vmem>>, vector<1x4x8xbf16>
    %51 = vector.shape_cast %50 : vector<1x4x8xbf16> to vector<4x8xbf16>
    %52 = arith.truncf %49 : vector<8x512xf32> to vector<8x512xbf16>
    %cst_27 = arith.constant dense<0.000000e+00> : vector<4x512xf32>
    %53 = tpu.matmul %51, %52, %cst_27 {dimension_numbers = #tpu.dot_dimension_numbers<[1], [0], [0], [1], [0, 0, 1, 1], [], []>} : vector<4x8xbf16>, vector<8x512xbf16>, vector<4x512xf32> -> vector<4x512xf32>
    %54 = arith.addf %45, %53 : vector<4x512xf32>
    %c511_i32 = arith.constant 511 : i32
    %55 = tpu.dynamic_rotate %13 by %c511_i32 dim 1 : vector<8x512xf32>, i32 -> vector<8x512xf32>
    %56 = vector.extract_strided_slice %14 {offsets = [4, 0], sizes = [1, 512], strides = [1, 1]} : vector<8x512xf32> to vector<1x512xf32>
    %57 = vector.broadcast %56 : vector<1x512xf32> to vector<8x512xf32>
    %58 = arith.mulf %55, %57 : vector<8x512xf32>
    %c5 = arith.constant 5 : index
    %c0_28 = arith.constant 0 : index
    %c0_29 = arith.constant 0 : index
    %59 = vector.load %arg5[%c5, %c0_28, %c0_29] : memref<9x4x8xbf16, #tpu.memory_space<vmem>>, vector<1x4x8xbf16>
    %60 = vector.shape_cast %59 : vector<1x4x8xbf16> to vector<4x8xbf16>
    %61 = arith.truncf %58 : vector<8x512xf32> to vector<8x512xbf16>
    %cst_30 = arith.constant dense<0.000000e+00> : vector<4x512xf32>
    %62 = tpu.matmul %60, %61, %cst_30 {dimension_numbers = #tpu.dot_dimension_numbers<[1], [0], [0], [1], [0, 0, 1, 1], [], []>} : vector<4x8xbf16>, vector<8x512xbf16>, vector<4x512xf32> -> vector<4x512xf32>
    %63 = arith.addf %54, %62 : vector<4x512xf32>
    %c497_i32 = arith.constant 497 : i32
    %64 = tpu.dynamic_rotate %13 by %c497_i32 dim 1 : vector<8x512xf32>, i32 -> vector<8x512xf32>
    %65 = vector.extract_strided_slice %14 {offsets = [5, 0], sizes = [1, 512], strides = [1, 1]} : vector<8x512xf32> to vector<1x512xf32>
    %66 = vector.broadcast %65 : vector<1x512xf32> to vector<8x512xf32>
    %67 = arith.mulf %64, %66 : vector<8x512xf32>
    %c6 = arith.constant 6 : index
    %c0_31 = arith.constant 0 : index
    %c0_32 = arith.constant 0 : index
    %68 = vector.load %arg5[%c6, %c0_31, %c0_32] : memref<9x4x8xbf16, #tpu.memory_space<vmem>>, vector<1x4x8xbf16>
    %69 = vector.shape_cast %68 : vector<1x4x8xbf16> to vector<4x8xbf16>
    %70 = arith.truncf %67 : vector<8x512xf32> to vector<8x512xbf16>
    %cst_33 = arith.constant dense<0.000000e+00> : vector<4x512xf32>
    %71 = tpu.matmul %69, %70, %cst_33 {dimension_numbers = #tpu.dot_dimension_numbers<[1], [0], [0], [1], [0, 0, 1, 1], [], []>} : vector<4x8xbf16>, vector<8x512xbf16>, vector<4x512xf32> -> vector<4x512xf32>
    %72 = arith.addf %63, %71 : vector<4x512xf32>
    %c496_i32 = arith.constant 496 : i32
    %73 = tpu.dynamic_rotate %13 by %c496_i32 dim 1 : vector<8x512xf32>, i32 -> vector<8x512xf32>
    %74 = vector.extract_strided_slice %14 {offsets = [6, 0], sizes = [1, 512], strides = [1, 1]} : vector<8x512xf32> to vector<1x512xf32>
    %75 = vector.broadcast %74 : vector<1x512xf32> to vector<8x512xf32>
    %76 = arith.mulf %73, %75 : vector<8x512xf32>
    %c7 = arith.constant 7 : index
    %c0_34 = arith.constant 0 : index
    %c0_35 = arith.constant 0 : index
    %77 = vector.load %arg5[%c7, %c0_34, %c0_35] : memref<9x4x8xbf16, #tpu.memory_space<vmem>>, vector<1x4x8xbf16>
    %78 = vector.shape_cast %77 : vector<1x4x8xbf16> to vector<4x8xbf16>
    %79 = arith.truncf %76 : vector<8x512xf32> to vector<8x512xbf16>
    %cst_36 = arith.constant dense<0.000000e+00> : vector<4x512xf32>
    %80 = tpu.matmul %78, %79, %cst_36 {dimension_numbers = #tpu.dot_dimension_numbers<[1], [0], [0], [1], [0, 0, 1, 1], [], []>} : vector<4x8xbf16>, vector<8x512xbf16>, vector<4x512xf32> -> vector<4x512xf32>
    %81 = arith.addf %72, %80 : vector<4x512xf32>
    %c495_i32 = arith.constant 495 : i32
    %82 = tpu.dynamic_rotate %13 by %c495_i32 dim 1 : vector<8x512xf32>, i32 -> vector<8x512xf32>
    %83 = vector.extract_strided_slice %14 {offsets = [7, 0], sizes = [1, 512], strides = [1, 1]} : vector<8x512xf32> to vector<1x512xf32>
    %84 = vector.broadcast %83 : vector<1x512xf32> to vector<8x512xf32>
    %85 = arith.mulf %82, %84 : vector<8x512xf32>
    %c8 = arith.constant 8 : index
    %c0_37 = arith.constant 0 : index
    %c0_38 = arith.constant 0 : index
    %86 = vector.load %arg5[%c8, %c0_37, %c0_38] : memref<9x4x8xbf16, #tpu.memory_space<vmem>>, vector<1x4x8xbf16>
    %87 = vector.shape_cast %86 : vector<1x4x8xbf16> to vector<4x8xbf16>
    %88 = arith.truncf %85 : vector<8x512xf32> to vector<8x512xbf16>
    %cst_39 = arith.constant dense<0.000000e+00> : vector<4x512xf32>
    %89 = tpu.matmul %87, %88, %cst_39 {dimension_numbers = #tpu.dot_dimension_numbers<[1], [0], [0], [1], [0, 0, 1, 1], [], []>} : vector<4x8xbf16>, vector<8x512xbf16>, vector<4x512xf32> -> vector<4x512xf32>
    %90 = arith.addf %81, %89 : vector<4x512xf32>
    %c0_40 = arith.constant 0 : index
    %c0_41 = arith.constant 0 : index
    %91 = vector.load %arg6[%c0_40, %c0_41] : memref<4x1xf32, #tpu.memory_space<vmem>>, vector<4x1xf32>
    %92 = vector.broadcast %91 : vector<4x1xf32> to vector<4x512xf32>
    %93 = arith.addf %90, %92 : vector<4x512xf32>
    %cst_42 = arith.constant 1.000000e-01 : f32
    %94 = vector.broadcast %cst_42 : f32 to vector<4x512xf32>
    %95 = arith.mulf %94, %93 : vector<4x512xf32>
    %96 = arith.maximumf %93, %95 : vector<4x512xf32>
    %97 = arith.addf %96, %4 : vector<4x512xf32>
    %98 = vector.extract_strided_slice %97 {offsets = [0, 0], sizes = [4, 256], strides = [1, 1]} : vector<4x512xf32> to vector<4x256xf32>
    %c0_43 = arith.constant 0 : index
    %c0_44 = arith.constant 0 : index
    %c0_45 = arith.constant 0 : index
    %99 = vector.load %arg7[%c0_43, %c0_44, %c0_45] : memref<2x4x256xf32, #tpu.memory_space<vmem>>, vector<1x4x256xf32>
    %100 = vector.shape_cast %99 : vector<1x4x256xf32> to vector<4x256xf32>
    %101 = vector.shape_cast %98 : vector<4x256xf32> to vector<1x4x256xf32>
    tpu.vector_store %arg7[%c0_43, %c0_44, %c0_45], %101 {strides = array<i32>} : memref<2x4x256xf32, #tpu.memory_space<vmem>>, vector<1x4x256xf32>,
    %102 = vector.extract_strided_slice %97 {offsets = [0, 256], sizes = [4, 256], strides = [1, 1]} : vector<4x512xf32> to vector<4x256xf32>
    %c1_46 = arith.constant 1 : index
    %c0_47 = arith.constant 0 : index
    %c0_48 = arith.constant 0 : index
    %103 = vector.load %arg7[%c1_46, %c0_47, %c0_48] : memref<2x4x256xf32, #tpu.memory_space<vmem>>, vector<1x4x256xf32>
    %104 = vector.shape_cast %103 : vector<1x4x256xf32> to vector<4x256xf32>
    %105 = vector.shape_cast %102 : vector<4x256xf32> to vector<1x4x256xf32>
    tpu.vector_store %arg7[%c1_46, %c0_47, %c0_48], %105 {strides = array<i32>} : memref<2x4x256xf32, #tpu.memory_space<vmem>>, vector<1x4x256xf32>,
    return
  }
  func.func @transform_0(%arg0: i32) -> (i32, i32, i32) {
    %c0_i32 = arith.constant 0 : i32
    %c0_i32_0 = arith.constant 0 : i32
    %c0_i32_1 = arith.constant 0 : i32
    return %arg0, %c0_i32, %c0_i32_0 : i32, i32, i32
  }
  func.func @transform_1(%arg0: i32) -> (i32, i32) {
    %c0_i32 = arith.constant 0 : i32
    %c0_i32_0 = arith.constant 0 : i32
    %c0_i32_1 = arith.constant 0 : i32
    return %c0_i32, %c0_i32_0 : i32, i32
  }
  func.func @transform_2(%arg0: i32) -> (i32, i32) {
    %c0_i32 = arith.constant 0 : i32
    %c0_i32_0 = arith.constant 0 : i32
    %c0_i32_1 = arith.constant 0 : i32
    return %c0_i32, %c0_i32_0 : i32, i32
  }
  func.func @transform_3(%arg0: i32) -> (i32, i32) {
    %c0_i32 = arith.constant 0 : i32
    %c0_i32_0 = arith.constant 0 : i32
    %c0_i32_1 = arith.constant 0 : i32
    return %c0_i32, %c0_i32_0 : i32, i32
  }
  func.func @transform_4(%arg0: i32) -> (i32, i32, i32) {
    %c0_i32 = arith.constant 0 : i32
    %c0_i32_0 = arith.constant 0 : i32
    %c0_i32_1 = arith.constant 0 : i32
    %c0_i32_2 = arith.constant 0 : i32
    return %c0_i32, %c0_i32_0, %c0_i32_1 : i32, i32, i32
  }
  func.func @transform_5(%arg0: i32) -> (i32, i32) {
    %c0_i32 = arith.constant 0 : i32
    %c0_i32_0 = arith.constant 0 : i32
    %c0_i32_1 = arith.constant 0 : i32
    return %c0_i32, %c0_i32_0 : i32, i32
  }
  func.func @transform_6(%arg0: i32) -> (i32, i32, i32) {
    %c0_i32 = arith.constant 0 : i32
    %c0_i32_0 = arith.constant 0 : i32
    %c0_i32_1 = arith.constant 0 : i32
    return %arg0, %c0_i32, %c0_i32_0 : i32, i32, i32
  }
}

</mosaic_0001>

<llo_original>
// kernel: tpu_custom_call.1
$region0: #{tpu_custom_call.1}
  #allocation0 [shape = 'u32[]', space=smem, size = 0x4, offset = 0x4, fixed_abs, tag = 'smem constant byte address 0x4 - core index']
  #allocation1 [shape = 'u32[144,128]{1,0:T(1,128)}', space=vmem, size = 0x12000, scoped, tag = 'internal scratch']
  %s0 = inlined_call_operand.hbm [shape: f32[2,4,256], index: 0, kind: input, shape index: {}]
  %s1 = inlined_call_operand.hbm [shape: f32[8,512], index: 1, kind: input, shape index: {}]
  %s2 = inlined_call_operand.hbm [shape: bf16[8,4], index: 2, kind: input, shape index: {}]
  %s3 = inlined_call_operand.hbm [shape: f32[8,1], index: 3, kind: input, shape index: {}]
  %s4 = inlined_call_operand.hbm [shape: bf16[9,4,8], index: 4, kind: input, shape index: {}]
  %s5 = inlined_call_operand.hbm [shape: f32[4,1], index: 5, kind: input, shape index: {}]
  %s6 = inlined_call_operand.hbm [shape: f32[2,4,256], index: 6, kind: output, shape index: {}]
  %s7 = sld [smem:[#allocation0]]
  $region58: #{tpu_custom_call.1} parent=0
    _
  %s9 = ssub.s32 1, %s7
  %s10 = scalar_select 0, %s9, %s7
  $region1: #{tpu_custom_call.1} parent=0
    #allocation2 [shape = 'u8[8192]{0}', space=vmem, size = 0x2000, scoped, tag = 'input window, operand 0, single buffered']
    #allocation3 [shape = 's32[1]{0}', space=sflag, size = 0x4, scoped, tag = 'scoped memory for tpu_custom_call.1']
    #allocation4 [shape = 's32[1]{0}', space=sflag, size = 0x4, scoped, tag = 'scoped memory for tpu_custom_call.1']
    #allocation5 [shape = 'u8[16384]{0}', space=vmem, size = 0x4000, scoped, tag = 'input window, operand 1, single buffered']
    #allocation6 [shape = 's32[1]{0}', space=sflag, size = 0x4, scoped, tag = 'scoped memory for tpu_custom_call.1']
    #allocation7 [shape = 'u8[2048]{0}', space=vmem, size = 0x800, scoped, tag = 'input window, operand 2, single buffered']
    #allocation8 [shape = 'u8[4096]{0}', space=vmem, size = 0x1000, scoped, tag = 'input window, operand 3, single buffered']
    #allocation9 [shape = 's32[1]{0}', space=sflag, size = 0x4, scoped, tag = 'scoped memory for tpu_custom_call.1']
    #allocation10 [shape = 'u8[9216]{0}', space=vmem, size = 0x2400, scoped, tag = 'input window, operand 4, single buffered']
    #allocation11 [shape = 'u8[2048]{0}', space=vmem, size = 0x800, scoped, tag = 'input window, operand 5, single buffered']
    #allocation12 [shape = 's32[1]{0}', space=sflag, size = 0x4, scoped, tag = 'scoped memory for tpu_custom_call.1']
    #allocation13 [shape = 'u8[8192]{0}', space=vmem, size = 0x2000, scoped, tag = 'output window, operand 0, single buffered']
    %11 = vsyncpa [#allocation3], 0
    %12 = vsyncpa [#allocation6], 0
    %13 = vsyncpa [#allocation9], 0
    %14 = vsyncpa [#allocation12], 0
    %15 = vsyncpa [#allocation4], 0
    // Predicated region
    $region2: #{tpu_custom_call.1} parent=1 // pred_check
      _
    $region3: #{tpu_custom_call.1} parent=1 // pred_check_branch
      %17 = sbr.rel (0) target = $region5
    $region4: #{tpu_custom_call.1} parent=1 // pred_region
      %s19 = ssub.s32 256, 256
      %20 = vsyncadd [#allocation3], %s19
      %s21 = sshll.u32 [#allocation2], 4
      %s22 = int_to_ptr.vmem [resolvable:$true] %s21
      %27 = dma.hbm_to_vmem [thread:$0]  %s0, 256, %s22, [#allocation3], 128, 128, 8
    $region5: #{tpu_custom_call.1} parent=1 // pred_fallthru
      _
    // Predicated region
    $region6: #{tpu_custom_call.1} parent=1 // pred_check
      _
    $region7: #{tpu_custom_call.1} parent=1 // pred_check_branch
      %29 = sbr.rel (0) target = $region9
    $region8: #{tpu_custom_call.1} parent=1 // pred_region
      %s31 = ssub.s32 512, 512
      %32 = vsyncadd [#allocation6], %s31
      %s34 = sshll.u32 [#allocation5], 4
      %s35 = int_to_ptr.vmem [resolvable:$true] %s34
      %37 = dma.hbm_to_vmem [thread:$0]  %s1, 512, %s35, [#allocation6]
    $region9: #{tpu_custom_call.1} parent=1 // pred_fallthru
      _
    // Predicated region
    $region10: #{tpu_custom_call.1} parent=1 // pred_check
      _
    $region11: #{tpu_custom_call.1} parent=1 // pred_check_branch
      %39 = sbr.rel (0) target = $region13
    $region12: #{tpu_custom_call.1} parent=1 // pred_region
      %s41 = ssub.s32 64, 64
      %42 = vsyncadd [#allocation6], %s41
      %s44 = sshll.u32 [#allocation7], 4
      %s45 = int_to_ptr.vmem [resolvable:$true] %s44
      %47 = dma.hbm_to_vmem [thread:$0]  %s2, 64, %s45, [#allocation6]
    $region13: #{tpu_custom_call.1} parent=1 // pred_fallthru
      _
    // Predicated region
    $region14: #{tpu_custom_call.1} parent=1 // pred_check
      _
    $region15: #{tpu_custom_call.1} parent=1 // pred_check_branch
      %49 = sbr.rel (0) target = $region17
    $region16: #{tpu_custom_call.1} parent=1 // pred_region
      %s51 = ssub.s32 128, 128
      %52 = vsyncadd [#allocation9], %s51
      %s54 = sshll.u32 [#allocation8], 4
      %s55 = int_to_ptr.vmem [resolvable:$true] %s54
      %57 = dma.hbm_to_vmem [thread:$0]  %s3, 128, %s55, [#allocation9]
    $region17: #{tpu_custom_call.1} parent=1 // pred_fallthru
      _
    // Predicated region
    $region18: #{tpu_custom_call.1} parent=1 // pred_check
      _
    $region19: #{tpu_custom_call.1} parent=1 // pred_check_branch
      %59 = sbr.rel (0) target = $region21
    $region20: #{tpu_custom_call.1} parent=1 // pred_region
      %s61 = ssub.s32 288, 288
      %62 = vsyncadd [#allocation9], %s61
      %s63 = sshll.u32 [#allocation10], 4
      %s64 = int_to_ptr.vmem [resolvable:$true] %s63
      %69 = dma.hbm_to_vmem [thread:$0]  %s4, 288, %s64, [#allocation9], 32, 32, 2
    $region21: #{tpu_custom_call.1} parent=1 // pred_fallthru
      _
    // Predicated region
    $region22: #{tpu_custom_call.1} parent=1 // pred_check
      _
    $region23: #{tpu_custom_call.1} parent=1 // pred_check_branch
      %71 = sbr.rel (0) target = $region25
    $region24: #{tpu_custom_call.1} parent=1 // pred_region
      %s73 = ssub.s32 64, 64
      %74 = vsyncadd [#allocation12], %s73
      %s76 = sshll.u32 [#allocation11], 4
      %s77 = int_to_ptr.vmem [resolvable:$true] %s76
      %79 = dma.hbm_to_vmem [thread:$0]  %s5, 64, %s77, [#allocation12]
    $region25: #{tpu_custom_call.1} parent=1 // pred_fallthru
      _
    // Predicated region
    $region26: #{tpu_custom_call.1} parent=1 // pred_check
      _
    $region27: #{tpu_custom_call.1} parent=1 // pred_check_branch
      %81 = sbr.rel (0) target = $region29
    $region28: #{tpu_custom_call.1} parent=1 // pred_region
      %82 = dma.done [#allocation3], 256
    $region29: #{tpu_custom_call.1} parent=1 // pred_fallthru
      _
    // Predicated region
    $region30: #{tpu_custom_call.1} parent=1 // pred_check
      _
    $region31: #{tpu_custom_call.1} parent=1 // pred_check_branch
      %84 = sbr.rel (0) target = $region33
    $region32: #{tpu_custom_call.1} parent=1 // pred_region
      %85 = dma.done [#allocation6], 512
    $region33: #{tpu_custom_call.1} parent=1 // pred_fallthru
      _
    // Predicated region
    $region34: #{tpu_custom_call.1} parent=1 // pred_check
      _
    $region35: #{tpu_custom_call.1} parent=1 // pred_check_branch
      %87 = sbr.rel (0) target = $region37
    $region36: #{tpu_custom_call.1} parent=1 // pred_region
      %88 = dma.done [#allocation6], 64
    $region37: #{tpu_custom_call.1} parent=1 // pred_fallthru
      _
    // Predicated region
    $region38: #{tpu_custom_call.1} parent=1 // pred_check
      _
    $region39: #{tpu_custom_call.1} parent=1 // pred_check_branch
      %90 = sbr.rel (0) target = $region41
    $region40: #{tpu_custom_call.1} parent=1 // pred_region
      %91 = dma.done [#allocation9], 128
    $region41: #{tpu_custom_call.1} parent=1 // pred_fallthru
      _
    // Predicated region
    $region42: #{tpu_custom_call.1} parent=1 // pred_check
      _
    $region43: #{tpu_custom_call.1} parent=1 // pred_check_branch
      %93 = sbr.rel (0) target = $region45
    $region44: #{tpu_custom_call.1} parent=1 // pred_region
      %94 = dma.done [#allocation9], 288
    $region45: #{tpu_custom_call.1} parent=1 // pred_fallthru
      _
    // Predicated region
    $region46: #{tpu_custom_call.1} parent=1 // pred_check
      _
    $region47: #{tpu_custom_call.1} parent=1 // pred_check_branch
      %96 = sbr.rel (0) target = $region49
    $region48: #{tpu_custom_call.1} parent=1 // pred_region
      %97 = dma.done [#allocation12], 64
    $region49: #{tpu_custom_call.1} parent=1 // pred_fallthru
      _
    %v99 = vld [vmem:[#allocation2] sm:$0xff]
    %s100 = scalar_lea.vmem [#allocation2], 8
    %v101 = vld [vmem:[%s100] sm:$0xff]
    %v103 = vcombine.high %v99, %v99
    %v106 = vcombine.high %v101, %v101
    %v108 = vld [vmem:[#allocation7] sm:$0xf]
    %v109 = vpack.c.bf16 %v99, %v99
    %v110 = vpack.c.bf16 %v103, %v103
    %v111 = vpack.c.bf16 %v101, %v101
    %v112 = vpack.c.bf16 %v106, %v106
    %v113 = vld [vmem:[#allocation8] sm:$0xff]
    %115 = vset.pattern.permute.xlu0 0
    %116 = vperm.xlu0 %115, %v113
    %v117 = vpop.permute.xlu0 %116
    %vm119 = vcmask 31744
    %v121 = vsel %vm119, %v108, 0
    %vm123 = vcmask 1041408
    %v125 = vsel %vm123, %v109, 0
    %v128 = vsel %vm123, %v110, 0
    %v131 = vsel %vm123, %v111, 0
    %v134 = vsel %vm123, %v112, 0
    %136 = vmatprep.subr.bf16.mxu0 %v128
    %137 = vmatpush1.bf16.msra.mxu0 %v125
    %138 = vmatprep.subr.bf16.mxu0 0
    %139 = vmatpush1.bf16.msra.mxu0 0
    %140 = vmatprep.subr.bf16.mxu0 0
    %141 = vmatpush1.bf16.msra.mxu0 0
    %142 = vmatprep.subr.bf16.mxu0 0
    %143 = vmatpush1.bf16.msra.mxu0 0
    %144 = vmatprep.subr.bf16.mxu0 0
    %145 = vmatpush1.bf16.msra.mxu0 0
    %146 = vmatprep.subr.bf16.mxu0 0
    %147 = vmatpush1.bf16.msra.mxu0 0
    %148 = vmatprep.subr.bf16.mxu0 0
    %149 = vmatpush1.bf16.msra.mxu0 0
    %150 = vmatprep.subr.bf16.mxu0 0
    %151 = vmatpush1.bf16.msra.mxu0 0
    %152 = vmatprep.subr.bf16.mxu0 0
    %153 = vmatpush1.bf16.msra.mxu0 0
    %154 = vmatprep.subr.bf16.mxu0 0
    %155 = vmatpush1.bf16.msra.mxu0 0
    %156 = vmatprep.subr.bf16.mxu0 0
    %157 = vmatpush1.bf16.msra.mxu0 0
    %158 = vmatprep.subr.bf16.mxu0 0
    %159 = vmatpush1.bf16.msra.mxu0 0
    %160 = vmatprep.subr.bf16.mxu0 0
    %161 = vmatpush1.bf16.msra.mxu0 0
    %162 = vmatprep.subr.bf16.mxu0 0
    %163 = vmatpush1.bf16.msra.mxu0 0
    %164 = vmatprep.subr.bf16.mxu0 0
    %165 = vmatpush1.bf16.msra.mxu0 0
    %166 = vmatprep.subr.bf16.mxu0 0
    %167 = vmatpush1.bf16.msra.mxu0 0
    %168 = vmatprep.mubr.bf16.mxu0 0
    %169 = vmatmul.mubr.bf16.gmra.mrb[0].mxu0 %v121
    %v170 = vpop.f32.mrb[0].mxu0
    %v171 = vadd.f32 %v117, %v170
    %v172 = vpop.f32.mrb[0].mxu0
    %v173 = vadd.f32 %v117, %v172
    %v174 = vpop.f32.mrb[0].mxu0
    %v175 = vpop.f32.mrb[0].mxu0
    %176 = vdwg.mxu0
    %177 = vmatprep.subr.bf16.mxu0 %v134
    %178 = vmatpush1.bf16.msra.mxu0 %v131
    %179 = vmatprep.subr.bf16.mxu0 0
    %180 = vmatpush1.bf16.msra.mxu0 0
    %181 = vmatprep.subr.bf16.mxu0 0
    %182 = vmatpush1.bf16.msra.mxu0 0
    %183 = vmatprep.subr.bf16.mxu0 0
    %184 = vmatpush1.bf16.msra.mxu0 0
    %185 = vmatprep.subr.bf16.mxu0 0
    %186 = vmatpush1.bf16.msra.mxu0 0
    %187 = vmatprep.subr.bf16.mxu0 0
    %188 = vmatpush1.bf16.msra.mxu0 0
    %189 = vmatprep.subr.bf16.mxu0 0
    %190 = vmatpush1.bf16.msra.mxu0 0
    %191 = vmatprep.subr.bf16.mxu0 0
    %192 = vmatpush1.bf16.msra.mxu0 0
    %193 = vmatprep.subr.bf16.mxu0 0
    %194 = vmatpush1.bf16.msra.mxu0 0
    %195 = vmatprep.subr.bf16.mxu0 0
    %196 = vmatpush1.bf16.msra.mxu0 0
    %197 = vmatprep.subr.bf16.mxu0 0
    %198 = vmatpush1.bf16.msra.mxu0 0
    %199 = vmatprep.subr.bf16.mxu0 0
    %200 = vmatpush1.bf16.msra.mxu0 0
    %201 = vmatprep.subr.bf16.mxu0 0
    %202 = vmatpush1.bf16.msra.mxu0 0
    %203 = vmatprep.subr.bf16.mxu0 0
    %204 = vmatpush1.bf16.msra.mxu0 0
    %205 = vmatprep.subr.bf16.mxu0 0
    %206 = vmatpush1.bf16.msra.mxu0 0
    %207 = vmatprep.subr.bf16.mxu0 0
    %208 = vmatpush1.bf16.msra.mxu0 0
    %209 = vmatprep.mubr.bf16.mxu0 0
    %210 = vmatmul.mubr.bf16.gmra.mrb[0].mxu0 %v121
    %v211 = vpop.f32.mrb[0].mxu0
    %v212 = vadd.f32 %v117, %v211
    %v213 = vpop.f32.mrb[0].mxu0
    %v214 = vadd.f32 %v117, %v213
    %v215 = vpop.f32.mrb[0].mxu0
    %v216 = vpop.f32.mrb[0].mxu0
    %217 = vdwg.mxu0
    %v218 = vmul.f32 %v171, 0.1
    %v219 = vmul.f32 %v173, 0.1
    %v220 = vmul.f32 %v212, 0.1
    %v221 = vmul.f32 %v214, 0.1
    %v222 = vmax.f32 %v171, %v218
    %v223 = vmax.f32 %v173, %v219
    %v224 = vmax.f32 %v212, %v220
    %v225 = vmax.f32 %v214, %v221
    %v226 = vld [vmem:[#allocation5] sm:$0xff]
    %v227 = vld [vmem:[#allocation5 + $0x8] sm:$0xff]
    %v228 = vld [vmem:[#allocation5 + $0x10] sm:$0xff]
    %v229 = vld [vmem:[#allocation5 + $0x18] sm:$0xff]
    %s230 = scalar_lea.vmem [#allocation10], 8
    %v231 = vld [vmem:[%s230] sm:$0x3]
    %v232 = vpack.c.bf16 %v222, %v222
    %v233 = vpack.c.bf16 %v223, %v223
    %v234 = vpack.c.bf16 %v224, %v224
    %v235 = vpack.c.bf16 %v225, %v225
    %236 = vrot.lane.b32.xlu0 %v222, 17
    %v237 = vpop.permute.xlu0 %236
    %238 = vrot.lane.b32.xlu0 %v223, 17
    %v239 = vpop.permute.xlu0 %238
    %240 = vrot.lane.b32.xlu0 %v224, 17
    %v241 = vpop.permute.xlu0 %240
    %242 = vrot.lane.b32.xlu0 %v225, 17
    %v243 = vpop.permute.xlu0 %242
    %v244 = vlaneseq
    %v245 = vand.u32 %v244, 127
    %vm246 = vcmp.lt.s32.totalorder %v245, 17
    %v247 = vsel %vm246, %v241, %v243
    %v248 = vsel %vm246, %v239, %v241
    %v249 = vsel %vm246, %v237, %v239
    %v250 = vsel %vm246, %v243, %v237
    %v251 = vlaneseq
    %v252 = vshrl.u32 %v251, 7
    %v253 = vsub.s32 0, %v252
    %v254 = vrot.slane %v226, %v253
    %v255 = vlaneseq
    %v256 = vshrl.u32 %v255, 7
    %v257 = vsub.s32 0, %v256
    %v258 = vrot.slane %v227, %v257
    %v259 = vlaneseq
    %v260 = vshrl.u32 %v259, 7
    %v261 = vsub.s32 0, %v260
    %v262 = vrot.slane %v228, %v261
    %v263 = vlaneseq
    %v264 = vshrl.u32 %v263, 7
    %v265 = vsub.s32 0, %v264
    %v266 = vrot.slane %v229, %v265
    %v267 = vmul.f32 %v250, %v254
    %v268 = vmul.f32 %v249, %v258
    %v269 = vmul.f32 %v248, %v262
    %v270 = vmul.f32 %v247, %v266
    %v271 = vld [vmem:[#allocation10] sm:$0x3]
    %v272 = vpack.c.bf16 %v267, %v267
    %v273 = vpack.c.bf16 %v268, %v268
    %v274 = vpack.c.bf16 %v269, %v269
    %v275 = vpack.c.bf16 %v270, %v270
    %vm276 = vcmask 64512
    %v278 = vsel %vm276, %v271, 0
    %vm280 = vcmask 1043456
    %v282 = vsel %vm280, %v272, 0
    %v285 = vsel %vm280, %v273, 0
    %v288 = vsel %vm280, %v274, 0
    %v291 = vsel %vm280, %v275, 0
    %293 = vmatprep.subr.bf16.mxu0 %v285
    %294 = vmatpush1.bf16.msra.mxu0 %v282
    %295 = vmatprep.subr.bf16.mxu0 0
    %296 = vmatpush1.bf16.msra.mxu0 0
    %297 = vmatprep.subr.bf16.mxu0 0
    %298 = vmatpush1.bf16.msra.mxu0 0
    %299 = vmatprep.subr.bf16.mxu0 0
    %300 = vmatpush1.bf16.msra.mxu0 0
    %301 = vmatprep.subr.bf16.mxu0 0
    %302 = vmatpush1.bf16.msra.mxu0 0
    %303 = vmatprep.subr.bf16.mxu0 0
    %304 = vmatpush1.bf16.msra.mxu0 0
    %305 = vmatprep.subr.bf16.mxu0 0
    %306 = vmatpush1.bf16.msra.mxu0 0
    %307 = vmatprep.subr.bf16.mxu0 0
    %308 = vmatpush1.bf16.msra.mxu0 0
    %309 = vmatprep.subr.bf16.mxu0 0
    %310 = vmatpush1.bf16.msra.mxu0 0
    %311 = vmatprep.subr.bf16.mxu0 0
    %312 = vmatpush1.bf16.msra.mxu0 0
    %313 = vmatprep.subr.bf16.mxu0 0
    %314 = vmatpush1.bf16.msra.mxu0 0
    %315 = vmatprep.subr.bf16.mxu0 0
    %316 = vmatpush1.bf16.msra.mxu0 0
    %317 = vmatprep.subr.bf16.mxu0 0
    %318 = vmatpush1.bf16.msra.mxu0 0
    %319 = vmatprep.subr.bf16.mxu0 0
    %320 = vmatpush1.bf16.msra.mxu0 0
    %321 = vmatprep.subr.bf16.mxu0 0
    %322 = vmatpush1.bf16.msra.mxu0 0
    %323 = vmatprep.subr.bf16.mxu0 0
    %324 = vmatpush1.bf16.msra.mxu0 0
    %325 = vmatprep.mubr.bf16.mxu0 0
    %326 = vmatmul.mubr.bf16.gmra.mrb[0].mxu0 %v278
    %v327 = vpop.f32.mrb[0].mxu0
    %v328 = vadd.f32 0.0, %v327
    %v329 = vpop.f32.mrb[0].mxu0
    %v330 = vadd.f32 0.0, %v329
    %v331 = vpop.f32.mrb[0].mxu0
    %v332 = vpop.f32.mrb[0].mxu0
    %333 = vdwg.mxu0
    %334 = vmatprep.subr.bf16.mxu0 %v291
    %335 = vmatpush1.bf16.msra.mxu0 %v288
    %336 = vmatprep.subr.bf16.mxu0 0
    %337 = vmatpush1.bf16.msra.mxu0 0
    %338 = vmatprep.subr.bf16.mxu0 0
    %339 = vmatpush1.bf16.msra.mxu0 0
    %340 = vmatprep.subr.bf16.mxu0 0
    %341 = vmatpush1.bf16.msra.mxu0 0
    %342 = vmatprep.subr.bf16.mxu0 0
    %343 = vmatpush1.bf16.msra.mxu0 0
    %344 = vmatprep.subr.bf16.mxu0 0
    %345 = vmatpush1.bf16.msra.mxu0 0
    %346 = vmatprep.subr.bf16.mxu0 0
    %347 = vmatpush1.bf16.msra.mxu0 0
    %348 = vmatprep.subr.bf16.mxu0 0
    %349 = vmatpush1.bf16.msra.mxu0 0
    %350 = vmatprep.subr.bf16.mxu0 0
    %351 = vmatpush1.bf16.msra.mxu0 0
    %352 = vmatprep.subr.bf16.mxu0 0
    %353 = vmatpush1.bf16.msra.mxu0 0
    %354 = vmatprep.subr.bf16.mxu0 0
    %355 = vmatpush1.bf16.msra.mxu0 0
    %356 = vmatprep.subr.bf16.mxu0 0
    %357 = vmatpush1.bf16.msra.mxu0 0
    %358 = vmatprep.subr.bf16.mxu0 0
    %359 = vmatpush1.bf16.msra.mxu0 0
    %360 = vmatprep.subr.bf16.mxu0 0
    %361 = vmatpush1.bf16.msra.mxu0 0
    %362 = vmatprep.subr.bf16.mxu0 0
    %363 = vmatpush1.bf16.msra.mxu0 0
    %364 = vmatprep.subr.bf16.mxu0 0
    %365 = vmatpush1.bf16.msra.mxu0 0
    %366 = vmatprep.mubr.bf16.mxu0 0
    %367 = vmatmul.mubr.bf16.gmra.mrb[0].mxu0 %v278
    %v368 = vpop.f32.mrb[0].mxu0
    %v369 = vadd.f32 0.0, %v368
    %v370 = vpop.f32.mrb[0].mxu0
    %v371 = vadd.f32 0.0, %v370
    %v372 = vpop.f32.mrb[0].mxu0
    %v373 = vpop.f32.mrb[0].mxu0
    %374 = vdwg.mxu0
    %v376 = vsel %vm276, %v231, 0
    %v379 = vsel %vm280, %v232, 0
    %v382 = vsel %vm280, %v233, 0
    %v385 = vsel %vm280, %v234, 0
    %v388 = vsel %vm280, %v235, 0
    %390 = vmatprep.subr.bf16.mxu0 %v382
    %391 = vmatpush1.bf16.msra.mxu0 %v379
    %392 = vmatprep.subr.bf16.mxu0 0
    %393 = vmatpush1.bf16.msra.mxu0 0
    %394 = vmatprep.subr.bf16.mxu0 0
    %395 = vmatpush1.bf16.msra.mxu0 0
    %396 = vmatprep.subr.bf16.mxu0 0
    %397 = vmatpush1.bf16.msra.mxu0 0
    %398 = vmatprep.subr.bf16.mxu0 0
    %399 = vmatpush1.bf16.msra.mxu0 0
    %400 = vmatprep.subr.bf16.mxu0 0
    %401 = vmatpush1.bf16.msra.mxu0 0
    %402 = vmatprep.subr.bf16.mxu0 0
    %403 = vmatpush1.bf16.msra.mxu0 0
    %404 = vmatprep.subr.bf16.mxu0 0
    %405 = vmatpush1.bf16.msra.mxu0 0
    %406 = vmatprep.subr.bf16.mxu0 0
    %407 = vmatpush1.bf16.msra.mxu0 0
    %408 = vmatprep.subr.bf16.mxu0 0
    %409 = vmatpush1.bf16.msra.mxu0 0
    %410 = vmatprep.subr.bf16.mxu0 0
    %411 = vmatpush1.bf16.msra.mxu0 0
    %412 = vmatprep.subr.bf16.mxu0 0
    %413 = vmatpush1.bf16.msra.mxu0 0
    %414 = vmatprep.subr.bf16.mxu0 0
    %415 = vmatpush1.bf16.msra.mxu0 0
    %416 = vmatprep.subr.bf16.mxu0 0
    %417 = vmatpush1.bf16.msra.mxu0 0
    %418 = vmatprep.subr.bf16.mxu0 0
    %419 = vmatpush1.bf16.msra.mxu0 0
    %420 = vmatprep.subr.bf16.mxu0 0
    %421 = vmatpush1.bf16.msra.mxu0 0
    %422 = vmatprep.mubr.bf16.mxu0 0
    %423 = vmatmul.mubr.bf16.gmra.mrb[0].mxu0 %v376
    %v424 = vpop.f32.mrb[0].mxu0
    %v425 = vadd.f32 %v328, %v424
    %v426 = vpop.f32.mrb[0].mxu0
    %v427 = vadd.f32 %v330, %v426
    %v428 = vpop.f32.mrb[0].mxu0
    %v429 = vpop.f32.mrb[0].mxu0
    %430 = vdwg.mxu0
    %431 = vmatprep.subr.bf16.mxu0 %v388
    %432 = vmatpush1.bf16.msra.mxu0 %v385
    %433 = vmatprep.subr.bf16.mxu0 0
    %434 = vmatpush1.bf16.msra.mxu0 0
    %435 = vmatprep.subr.bf16.mxu0 0
    %436 = vmatpush1.bf16.msra.mxu0 0
    %437 = vmatprep.subr.bf16.mxu0 0
    %438 = vmatpush1.bf16.msra.mxu0 0
    %439 = vmatprep.subr.bf16.mxu0 0
    %440 = vmatpush1.bf16.msra.mxu0 0
    %441 = vmatprep.subr.bf16.mxu0 0
    %442 = vmatpush1.bf16.msra.mxu0 0
    %443 = vmatprep.subr.bf16.mxu0 0
    %444 = vmatpush1.bf16.msra.mxu0 0
    %445 = vmatprep.subr.bf16.mxu0 0
    %446 = vmatpush1.bf16.msra.mxu0 0
    %447 = vmatprep.subr.bf16.mxu0 0
    %448 = vmatpush1.bf16.msra.mxu0 0
    %449 = vmatprep.subr.bf16.mxu0 0
    %450 = vmatpush1.bf16.msra.mxu0 0
    %451 = vmatprep.subr.bf16.mxu0 0
    %452 = vmatpush1.bf16.msra.mxu0 0
    %453 = vmatprep.subr.bf16.mxu0 0
    %454 = vmatpush1.bf16.msra.mxu0 0
    %455 = vmatprep.subr.bf16.mxu0 0
    %456 = vmatpush1.bf16.msra.mxu0 0
    %457 = vmatprep.subr.bf16.mxu0 0
    %458 = vmatpush1.bf16.msra.mxu0 0
    %459 = vmatprep.subr.bf16.mxu0 0
    %460 = vmatpush1.bf16.msra.mxu0 0
    %461 = vmatprep.subr.bf16.mxu0 0
    %462 = vmatpush1.bf16.msra.mxu0 0
    %463 = vmatprep.mubr.bf16.mxu0 0
    %464 = vmatmul.mubr.bf16.gmra.mrb[0].mxu0 %v376
    %v465 = vpop.f32.mrb[0].mxu0
    %v466 = vadd.f32 %v369, %v465
    %v467 = vpop.f32.mrb[0].mxu0
    %v468 = vadd.f32 %v371, %v467
    %v469 = vpop.f32.mrb[0].mxu0
    %v470 = vpop.f32.mrb[0].mxu0
    %471 = vdwg.mxu0
    %472 = vrot.lane.b32.xlu0 %v222, 16
    %v473 = vpop.permute.xlu0 %472
    %474 = vrot.lane.b32.xlu0 %v223, 16
    %v475 = vpop.permute.xlu0 %474
    %476 = vrot.lane.b32.xlu0 %v224, 16
    %v477 = vpop.permute.xlu0 %476
    %478 = vrot.lane.b32.xlu0 %v225, 16
    %v479 = vpop.permute.xlu0 %478
    %vm480 = vcmp.lt.s32.totalorder %v245, 16
    %v481 = vsel %vm480, %v477, %v479
    %v482 = vsel %vm480, %v475, %v477
    %v483 = vsel %vm480, %v473, %v475
    %v484 = vsel %vm480, %v479, %v473
    %v485 = vlaneseq
    %v486 = vshrl.u32 %v485, 7
    %v487 = vsub.s32 1, %v486
    %v488 = vrot.slane %v226, %v487
    %v489 = vlaneseq
    %v490 = vshrl.u32 %v489, 7
    %v491 = vsub.s32 1, %v490
    %v492 = vrot.slane %v227, %v491
    %v493 = vlaneseq
    %v494 = vshrl.u32 %v493, 7
    %v495 = vsub.s32 1, %v494
    %v496 = vrot.slane %v228, %v495
    %v497 = vlaneseq
    %v498 = vshrl.u32 %v497, 7
    %v499 = vsub.s32 1, %v498
    %v500 = vrot.slane %v229, %v499
    %v501 = vmul.f32 %v484, %v488
    %v502 = vmul.f32 %v483, %v492
    %v503 = vmul.f32 %v482, %v496
    %v504 = vmul.f32 %v481, %v500
    %s505 = scalar_lea.vmem [#allocation10], 2
    %v506 = vld [vmem:[%s505] sm:$0x3]
    %v507 = vpack.c.bf16 %v501, %v501
    %v508 = vpack.c.bf16 %v502, %v502
    %v509 = vpack.c.bf16 %v503, %v503
    %v510 = vpack.c.bf16 %v504, %v504
    %v512 = vsel %vm276, %v506, 0
    %v515 = vsel %vm280, %v507, 0
    %v518 = vsel %vm280, %v508, 0
    %v521 = vsel %vm280, %v509, 0
    %v524 = vsel %vm280, %v510, 0
    %526 = vmatprep.subr.bf16.mxu0 %v518
    %527 = vmatpush1.bf16.msra.mxu0 %v515
    %528 = vmatprep.subr.bf16.mxu0 0
    %529 = vmatpush1.bf16.msra.mxu0 0
    %530 = vmatprep.subr.bf16.mxu0 0
    %531 = vmatpush1.bf16.msra.mxu0 0
    %532 = vmatprep.subr.bf16.mxu0 0
    %533 = vmatpush1.bf16.msra.mxu0 0
    %534 = vmatprep.subr.bf16.mxu0 0
    %535 = vmatpush1.bf16.msra.mxu0 0
    %536 = vmatprep.subr.bf16.mxu0 0
    %537 = vmatpush1.bf16.msra.mxu0 0
    %538 = vmatprep.subr.bf16.mxu0 0
    %539 = vmatpush1.bf16.msra.mxu0 0
    %540 = vmatprep.subr.bf16.mxu0 0
    %541 = vmatpush1.bf16.msra.mxu0 0
    %542 = vmatprep.subr.bf16.mxu0 0
    %543 = vmatpush1.bf16.msra.mxu0 0
    %544 = vmatprep.subr.bf16.mxu0 0
    %545 = vmatpush1.bf16.msra.mxu0 0
    %546 = vmatprep.subr.bf16.mxu0 0
    %547 = vmatpush1.bf16.msra.mxu0 0
    %548 = vmatprep.subr.bf16.mxu0 0
    %549 = vmatpush1.bf16.msra.mxu0 0
    %550 = vmatprep.subr.bf16.mxu0 0
    %551 = vmatpush1.bf16.msra.mxu0 0
    %552 = vmatprep.subr.bf16.mxu0 0
    %553 = vmatpush1.bf16.msra.mxu0 0
    %554 = vmatprep.subr.bf16.mxu0 0
    %555 = vmatpush1.bf16.msra.mxu0 0
    %556 = vmatprep.subr.bf16.mxu0 0
    %557 = vmatpush1.bf16.msra.mxu0 0
    %558 = vmatprep.mubr.bf16.mxu0 0
    %559 = vmatmul.mubr.bf16.gmra.mrb[0].mxu0 %v512
    %v560 = vpop.f32.mrb[0].mxu0
    %v561 = vadd.f32 0.0, %v560
    %v562 = vpop.f32.mrb[0].mxu0
    %v563 = vadd.f32 0.0, %v562
    %v564 = vpop.f32.mrb[0].mxu0
    %v565 = vpop.f32.mrb[0].mxu0
    %566 = vdwg.mxu0
    %567 = vmatprep.subr.bf16.mxu0 %v524
    %568 = vmatpush1.bf16.msra.mxu0 %v521
    %569 = vmatprep.subr.bf16.mxu0 0
    %570 = vmatpush1.bf16.msra.mxu0 0
    %571 = vmatprep.subr.bf16.mxu0 0
    %572 = vmatpush1.bf16.msra.mxu0 0
    %573 = vmatprep.subr.bf16.mxu0 0
    %574 = vmatpush1.bf16.msra.mxu0 0
    %575 = vmatprep.subr.bf16.mxu0 0
    %576 = vmatpush1.bf16.msra.mxu0 0
    %577 = vmatprep.subr.bf16.mxu0 0
    %578 = vmatpush1.bf16.msra.mxu0 0
    %579 = vmatprep.subr.bf16.mxu0 0
    %580 = vmatpush1.bf16.msra.mxu0 0
    %581 = vmatprep.subr.bf16.mxu0 0
    %582 = vmatpush1.bf16.msra.mxu0 0
    %583 = vmatprep.subr.bf16.mxu0 0
    %584 = vmatpush1.bf16.msra.mxu0 0
    %585 = vmatprep.subr.bf16.mxu0 0
    %586 = vmatpush1.bf16.msra.mxu0 0
    %587 = vmatprep.subr.bf16.mxu0 0
    %588 = vmatpush1.bf16.msra.mxu0 0
    %589 = vmatprep.subr.bf16.mxu0 0
    %590 = vmatpush1.bf16.msra.mxu0 0
    %591 = vmatprep.subr.bf16.mxu0 0
    %592 = vmatpush1.bf16.msra.mxu0 0
    %593 = vmatprep.subr.bf16.mxu0 0
    %594 = vmatpush1.bf16.msra.mxu0 0
    %595 = vmatprep.subr.bf16.mxu0 0
    %596 = vmatpush1.bf16.msra.mxu0 0
    %597 = vmatprep.subr.bf16.mxu0 0
    %598 = vmatpush1.bf16.msra.mxu0 0
    %599 = vmatprep.mubr.bf16.mxu0 0
    %600 = vmatmul.mubr.bf16.gmra.mrb[0].mxu0 %v512
    %v601 = vpop.f32.mrb[0].mxu0
    %v602 = vadd.f32 0.0, %v601
    %v603 = vpop.f32.mrb[0].mxu0
    %v604 = vadd.f32 0.0, %v603
    %v605 = vpop.f32.mrb[0].mxu0
    %v606 = vpop.f32.mrb[0].mxu0
    %607 = vdwg.mxu0
    %v608 = vadd.f32 %v425, %v561
    %v609 = vadd.f32 %v427, %v563
    %v610 = vadd.f32 %v466, %v602
    %v611 = vadd.f32 %v468, %v604
    %612 = vrot.lane.b32.xlu0 %v222, 15
    %v613 = vpop.permute.xlu0 %612
    %614 = vrot.lane.b32.xlu0 %v223, 15
    %v615 = vpop.permute.xlu0 %614
    %616 = vrot.lane.b32.xlu0 %v224, 15
    %v617 = vpop.permute.xlu0 %616
    %618 = vrot.lane.b32.xlu0 %v225, 15
    %v619 = vpop.permute.xlu0 %618
    %vm620 = vcmp.lt.s32.totalorder %v245, 15
    %v621 = vsel %vm620, %v617, %v619
    %v622 = vsel %vm620, %v615, %v617
    %v623 = vsel %vm620, %v613, %v615
    %v624 = vsel %vm620, %v619, %v613
    %v625 = vlaneseq
    %v626 = vshrl.u32 %v625, 7
    %v627 = vsub.s32 2, %v626
    %v628 = vrot.slane %v226, %v627
    %v629 = vlaneseq
    %v630 = vshrl.u32 %v629, 7
    %v631 = vsub.s32 2, %v630
    %v632 = vrot.slane %v227, %v631
    %v633 = vlaneseq
    %v634 = vshrl.u32 %v633, 7
    %v635 = vsub.s32 2, %v634
    %v636 = vrot.slane %v228, %v635
    %v637 = vlaneseq
    %v638 = vshrl.u32 %v637, 7
    %v639 = vsub.s32 2, %v638
    %v640 = vrot.slane %v229, %v639
    %v641 = vmul.f32 %v624, %v628
    %v642 = vmul.f32 %v623, %v632
    %v643 = vmul.f32 %v622, %v636
    %v644 = vmul.f32 %v621, %v640
    %s645 = scalar_lea.vmem [#allocation10], 4
    %v646 = vld [vmem:[%s645] sm:$0x3]
    %v647 = vpack.c.bf16 %v641, %v641
    %v648 = vpack.c.bf16 %v642, %v642
    %v649 = vpack.c.bf16 %v643, %v643
    %v650 = vpack.c.bf16 %v644, %v644
    %v652 = vsel %vm276, %v646, 0
    %v655 = vsel %vm280, %v647, 0
    %v658 = vsel %vm280, %v648, 0
    %v661 = vsel %vm280, %v649, 0
    %v664 = vsel %vm280, %v650, 0
    %666 = vmatprep.subr.bf16.mxu0 %v658
    %667 = vmatpush1.bf16.msra.mxu0 %v655
    %668 = vmatprep.subr.bf16.mxu0 0
    %669 = vmatpush1.bf16.msra.mxu0 0
    %670 = vmatprep.subr.bf16.mxu0 0
    %671 = vmatpush1.bf16.msra.mxu0 0
    %672 = vmatprep.subr.bf16.mxu0 0
    %673 = vmatpush1.bf16.msra.mxu0 0
    %674 = vmatprep.subr.bf16.mxu0 0
    %675 = vmatpush1.bf16.msra.mxu0 0
    %676 = vmatprep.subr.bf16.mxu0 0
    %677 = vmatpush1.bf16.msra.mxu0 0
    %678 = vmatprep.subr.bf16.mxu0 0
    %679 = vmatpush1.bf16.msra.mxu0 0
    %680 = vmatprep.subr.bf16.mxu0 0
    %681 = vmatpush1.bf16.msra.mxu0 0
    %682 = vmatprep.subr.bf16.mxu0 0
    %683 = vmatpush1.bf16.msra.mxu0 0
    %684 = vmatprep.subr.bf16.mxu0 0
    %685 = vmatpush1.bf16.msra.mxu0 0
    %686 = vmatprep.subr.bf16.mxu0 0
    %687 = vmatpush1.bf16.msra.mxu0 0
    %688 = vmatprep.subr.bf16.mxu0 0
    %689 = vmatpush1.bf16.msra.mxu0 0
    %690 = vmatprep.subr.bf16.mxu0 0
    %691 = vmatpush1.bf16.msra.mxu0 0
    %692 = vmatprep.subr.bf16.mxu0 0
    %693 = vmatpush1.bf16.msra.mxu0 0
    %694 = vmatprep.subr.bf16.mxu0 0
    %695 = vmatpush1.bf16.msra.mxu0 0
    %696 = vmatprep.subr.bf16.mxu0 0
    %697 = vmatpush1.bf16.msra.mxu0 0
    %698 = vmatprep.mubr.bf16.mxu0 0
    %699 = vmatmul.mubr.bf16.gmra.mrb[0].mxu0 %v652
    %v700 = vpop.f32.mrb[0].mxu0
    %v701 = vadd.f32 0.0, %v700
    %v702 = vpop.f32.mrb[0].mxu0
    %v703 = vadd.f32 0.0, %v702
    %v704 = vpop.f32.mrb[0].mxu0
    %v705 = vpop.f32.mrb[0].mxu0
    %706 = vdwg.mxu0
    %707 = vmatprep.subr.bf16.mxu0 %v664
    %708 = vmatpush1.bf16.msra.mxu0 %v661
    %709 = vmatprep.subr.bf16.mxu0 0
    %710 = vmatpush1.bf16.msra.mxu0 0
    %711 = vmatprep.subr.bf16.mxu0 0
    %712 = vmatpush1.bf16.msra.mxu0 0
    %713 = vmatprep.subr.bf16.mxu0 0
    %714 = vmatpush1.bf16.msra.mxu0 0
    %715 = vmatprep.subr.bf16.mxu0 0
    %716 = vmatpush1.bf16.msra.mxu0 0
    %717 = vmatprep.subr.bf16.mxu0 0
    %718 = vmatpush1.bf16.msra.mxu0 0
    %719 = vmatprep.subr.bf16.mxu0 0
    %720 = vmatpush1.bf16.msra.mxu0 0
    %721 = vmatprep.subr.bf16.mxu0 0
    %722 = vmatpush1.bf16.msra.mxu0 0
    %723 = vmatprep.subr.bf16.mxu0 0
    %724 = vmatpush1.bf16.msra.mxu0 0
    %725 = vmatprep.subr.bf16.mxu0 0
    %726 = vmatpush1.bf16.msra.mxu0 0
    %727 = vmatprep.subr.bf16.mxu0 0
    %728 = vmatpush1.bf16.msra.mxu0 0
    %729 = vmatprep.subr.bf16.mxu0 0
    %730 = vmatpush1.bf16.msra.mxu0 0
    %731 = vmatprep.subr.bf16.mxu0 0
    %732 = vmatpush1.bf16.msra.mxu0 0
    %733 = vmatprep.subr.bf16.mxu0 0
    %734 = vmatpush1.bf16.msra.mxu0 0
    %735 = vmatprep.subr.bf16.mxu0 0
    %736 = vmatpush1.bf16.msra.mxu0 0
    %737 = vmatprep.subr.bf16.mxu0 0
    %738 = vmatpush1.bf16.msra.mxu0 0
    %739 = vmatprep.mubr.bf16.mxu0 0
    %740 = vmatmul.mubr.bf16.gmra.mrb[0].mxu0 %v652
    %v741 = vpop.f32.mrb[0].mxu0
    %v742 = vadd.f32 0.0, %v741
    %v743 = vpop.f32.mrb[0].mxu0
    %v744 = vadd.f32 0.0, %v743
    %v745 = vpop.f32.mrb[0].mxu0
    %v746 = vpop.f32.mrb[0].mxu0
    %747 = vdwg.mxu0
    %v748 = vadd.f32 %v608, %v701
    %v749 = vadd.f32 %v609, %v703
    %v750 = vadd.f32 %v610, %v742
    %v751 = vadd.f32 %v611, %v744
    %752 = vrot.lane.b32.xlu0 %v222, 1
    %v753 = vpop.permute.xlu0 %752
    %754 = vrot.lane.b32.xlu0 %v223, 1
    %v755 = vpop.permute.xlu0 %754
    %756 = vrot.lane.b32.xlu0 %v224, 1
    %v757 = vpop.permute.xlu0 %756
    %758 = vrot.lane.b32.xlu0 %v225, 1
    %v759 = vpop.permute.xlu0 %758
    %vm760 = vcmp.lt.s32.totalorder %v245, 1
    %v761 = vsel %vm760, %v757, %v759
    %v762 = vsel %vm760, %v755, %v757
    %v763 = vsel %vm760, %v753, %v755
    %v764 = vsel %vm760, %v759, %v753
    %v765 = vlaneseq
    %v766 = vshrl.u32 %v765, 7
    %v767 = vsub.s32 3, %v766
    %v768 = vrot.slane %v226, %v767
    %v769 = vlaneseq
    %v770 = vshrl.u32 %v769, 7
    %v771 = vsub.s32 3, %v770
    %v772 = vrot.slane %v227, %v771
    %v773 = vlaneseq
    %v774 = vshrl.u32 %v773, 7
    %v775 = vsub.s32 3, %v774
    %v776 = vrot.slane %v228, %v775
    %v777 = vlaneseq
    %v778 = vshrl.u32 %v777, 7
    %v779 = vsub.s32 3, %v778
    %v780 = vrot.slane %v229, %v779
    %v781 = vmul.f32 %v764, %v768
    %v782 = vmul.f32 %v763, %v772
    %v783 = vmul.f32 %v762, %v776
    %v784 = vmul.f32 %v761, %v780
    %s785 = scalar_lea.vmem [#allocation10], 6
    %v786 = vld [vmem:[%s785] sm:$0x3]
    %v787 = vpack.c.bf16 %v781, %v781
    %v788 = vpack.c.bf16 %v782, %v782
    %v789 = vpack.c.bf16 %v783, %v783
    %v790 = vpack.c.bf16 %v784, %v784
    %v792 = vsel %vm276, %v786, 0
    %v795 = vsel %vm280, %v787, 0
    %v798 = vsel %vm280, %v788, 0
    %v801 = vsel %vm280, %v789, 0
    %v804 = vsel %vm280, %v790, 0
    %806 = vmatprep.subr.bf16.mxu0 %v798
    %807 = vmatpush1.bf16.msra.mxu0 %v795
    %808 = vmatprep.subr.bf16.mxu0 0
    %809 = vmatpush1.bf16.msra.mxu0 0
    %810 = vmatprep.subr.bf16.mxu0 0
    %811 = vmatpush1.bf16.msra.mxu0 0
    %812 = vmatprep.subr.bf16.mxu0 0
    %813 = vmatpush1.bf16.msra.mxu0 0
    %814 = vmatprep.subr.bf16.mxu0 0
    %815 = vmatpush1.bf16.msra.mxu0 0
    %816 = vmatprep.subr.bf16.mxu0 0
    %817 = vmatpush1.bf16.msra.mxu0 0
    %818 = vmatprep.subr.bf16.mxu0 0
    %819 = vmatpush1.bf16.msra.mxu0 0
    %820 = vmatprep.subr.bf16.mxu0 0
    %821 = vmatpush1.bf16.msra.mxu0 0
    %822 = vmatprep.subr.bf16.mxu0 0
    %823 = vmatpush1.bf16.msra.mxu0 0
    %824 = vmatprep.subr.bf16.mxu0 0
    %825 = vmatpush1.bf16.msra.mxu0 0
    %826 = vmatprep.subr.bf16.mxu0 0
    %827 = vmatpush1.bf16.msra.mxu0 0
    %828 = vmatprep.subr.bf16.mxu0 0
    %829 = vmatpush1.bf16.msra.mxu0 0
    %830 = vmatprep.subr.bf16.mxu0 0
    %831 = vmatpush1.bf16.msra.mxu0 0
    %832 = vmatprep.subr.bf16.mxu0 0
    %833 = vmatpush1.bf16.msra.mxu0 0
    %834 = vmatprep.subr.bf16.mxu0 0
    %835 = vmatpush1.bf16.msra.mxu0 0
    %836 = vmatprep.subr.bf16.mxu0 0
    %837 = vmatpush1.bf16.msra.mxu0 0
    %838 = vmatprep.mubr.bf16.mxu0 0
    %839 = vmatmul.mubr.bf16.gmra.mrb[0].mxu0 %v792
    %v840 = vpop.f32.mrb[0].mxu0
    %v841 = vadd.f32 0.0, %v840
    %v842 = vpop.f32.mrb[0].mxu0
    %v843 = vadd.f32 0.0, %v842
    %v844 = vpop.f32.mrb[0].mxu0
    %v845 = vpop.f32.mrb[0].mxu0
    %846 = vdwg.mxu0
    %847 = vmatprep.subr.bf16.mxu0 %v804
    %848 = vmatpush1.bf16.msra.mxu0 %v801
    %849 = vmatprep.subr.bf16.mxu0 0
    %850 = vmatpush1.bf16.msra.mxu0 0
    %851 = vmatprep.subr.bf16.mxu0 0
    %852 = vmatpush1.bf16.msra.mxu0 0
    %853 = vmatprep.subr.bf16.mxu0 0
    %854 = vmatpush1.bf16.msra.mxu0 0
    %855 = vmatprep.subr.bf16.mxu0 0
    %856 = vmatpush1.bf16.msra.mxu0 0
    %857 = vmatprep.subr.bf16.mxu0 0
    %858 = vmatpush1.bf16.msra.mxu0 0
    %859 = vmatprep.subr.bf16.mxu0 0
    %860 = vmatpush1.bf16.msra.mxu0 0
    %861 = vmatprep.subr.bf16.mxu0 0
    %862 = vmatpush1.bf16.msra.mxu0 0
    %863 = vmatprep.subr.bf16.mxu0 0
    %864 = vmatpush1.bf16.msra.mxu0 0
    %865 = vmatprep.subr.bf16.mxu0 0
    %866 = vmatpush1.bf16.msra.mxu0 0
    %867 = vmatprep.subr.bf16.mxu0 0
    %868 = vmatpush1.bf16.msra.mxu0 0
    %869 = vmatprep.subr.bf16.mxu0 0
    %870 = vmatpush1.bf16.msra.mxu0 0
    %871 = vmatprep.subr.bf16.mxu0 0
    %872 = vmatpush1.bf16.msra.mxu0 0
    %873 = vmatprep.subr.bf16.mxu0 0
    %874 = vmatpush1.bf16.msra.mxu0 0
    %875 = vmatprep.subr.bf16.mxu0 0
    %876 = vmatpush1.bf16.msra.mxu0 0
    %877 = vmatprep.subr.bf16.mxu0 0
    %878 = vmatpush1.bf16.msra.mxu0 0
    %879 = vmatprep.mubr.bf16.mxu0 0
    %880 = vmatmul.mubr.bf16.gmra.mrb[0].mxu0 %v792
    %v881 = vpop.f32.mrb[0].mxu0
    %v882 = vadd.f32 0.0, %v881
    %v883 = vpop.f32.mrb[0].mxu0
    %v884 = vadd.f32 0.0, %v883
    %v885 = vpop.f32.mrb[0].mxu0
    %v886 = vpop.f32.mrb[0].mxu0
    %887 = vdwg.mxu0
    %v888 = vadd.f32 %v748, %v841
    %v889 = vadd.f32 %v749, %v843
    %v890 = vadd.f32 %v750, %v882
    %v891 = vadd.f32 %v751, %v884
    %892 = vrot.lane.b32.xlu0 %v222, 127
    %v893 = vpop.permute.xlu0 %892
    %894 = vrot.lane.b32.xlu0 %v223, 127
    %v895 = vpop.permute.xlu0 %894
    %896 = vrot.lane.b32.xlu0 %v224, 127
    %v897 = vpop.permute.xlu0 %896
    %898 = vrot.lane.b32.xlu0 %v225, 127
    %v899 = vpop.permute.xlu0 %898
    %vm900 = vcmp.lt.s32.totalorder %v245, 127
    %v901 = vsel %vm900, %v897, %v899
    %v902 = vsel %vm900, %v895, %v897
    %v903 = vsel %vm900, %v893, %v895
    %v904 = vsel %vm900, %v899, %v893
    %v905 = vlaneseq
    %v906 = vshrl.u32 %v905, 7
    %v907 = vsub.s32 4, %v906
    %v908 = vrot.slane %v226, %v907
    %v909 = vlaneseq
    %v910 = vshrl.u32 %v909, 7
    %v911 = vsub.s32 4, %v910
    %v912 = vrot.slane %v227, %v911
    %v913 = vlaneseq
    %v914 = vshrl.u32 %v913, 7
    %v915 = vsub.s32 4, %v914
    %v916 = vrot.slane %v228, %v915
    %v917 = vlaneseq
    %v918 = vshrl.u32 %v917, 7
    %v919 = vsub.s32 4, %v918
    %v920 = vrot.slane %v229, %v919
    %v921 = vmul.f32 %v903, %v908
    %v922 = vmul.f32 %v902, %v912
    %v923 = vmul.f32 %v901, %v916
    %v924 = vmul.f32 %v904, %v920
    %s925 = scalar_lea.vmem [#allocation10], 10
    %v926 = vld [vmem:[%s925] sm:$0x3]
    %v927 = vpack.c.bf16 %v921, %v921
    %v928 = vpack.c.bf16 %v922, %v922
    %v929 = vpack.c.bf16 %v923, %v923
    %v930 = vpack.c.bf16 %v924, %v924
    %v932 = vsel %vm276, %v926, 0
    %v935 = vsel %vm280, %v927, 0
    %v938 = vsel %vm280, %v928, 0
    %v941 = vsel %vm280, %v929, 0
    %v944 = vsel %vm280, %v930, 0
    %946 = vmatprep.subr.bf16.mxu0 %v938
    %947 = vmatpush1.bf16.msra.mxu0 %v935
    %948 = vmatprep.subr.bf16.mxu0 0
    %949 = vmatpush1.bf16.msra.mxu0 0
    %950 = vmatprep.subr.bf16.mxu0 0
    %951 = vmatpush1.bf16.msra.mxu0 0
    %952 = vmatprep.subr.bf16.mxu0 0
    %953 = vmatpush1.bf16.msra.mxu0 0
    %954 = vmatprep.subr.bf16.mxu0 0
    %955 = vmatpush1.bf16.msra.mxu0 0
    %956 = vmatprep.subr.bf16.mxu0 0
    %957 = vmatpush1.bf16.msra.mxu0 0
    %958 = vmatprep.subr.bf16.mxu0 0
    %959 = vmatpush1.bf16.msra.mxu0 0
    %960 = vmatprep.subr.bf16.mxu0 0
    %961 = vmatpush1.bf16.msra.mxu0 0
    %962 = vmatprep.subr.bf16.mxu0 0
    %963 = vmatpush1.bf16.msra.mxu0 0
    %964 = vmatprep.subr.bf16.mxu0 0
    %965 = vmatpush1.bf16.msra.mxu0 0
    %966 = vmatprep.subr.bf16.mxu0 0
    %967 = vmatpush1.bf16.msra.mxu0 0
    %968 = vmatprep.subr.bf16.mxu0 0
    %969 = vmatpush1.bf16.msra.mxu0 0
    %970 = vmatprep.subr.bf16.mxu0 0
    %971 = vmatpush1.bf16.msra.mxu0 0
    %972 = vmatprep.subr.bf16.mxu0 0
    %973 = vmatpush1.bf16.msra.mxu0 0
    %974 = vmatprep.subr.bf16.mxu0 0
    %975 = vmatpush1.bf16.msra.mxu0 0
    %976 = vmatprep.subr.bf16.mxu0 0
    %977 = vmatpush1.bf16.msra.mxu0 0
    %978 = vmatprep.mubr.bf16.mxu0 0
    %979 = vmatmul.mubr.bf16.gmra.mrb[0].mxu0 %v932
    %v980 = vpop.f32.mrb[0].mxu0
    %v981 = vadd.f32 0.0, %v980
    %v982 = vpop.f32.mrb[0].mxu0
    %v983 = vadd.f32 0.0, %v982
    %v984 = vpop.f32.mrb[0].mxu0
    %v985 = vpop.f32.mrb[0].mxu0
    %986 = vdwg.mxu0
    %987 = vmatprep.subr.bf16.mxu0 %v944
    %988 = vmatpush1.bf16.msra.mxu0 %v941
    %989 = vmatprep.subr.bf16.mxu0 0
    %990 = vmatpush1.bf16.msra.mxu0 0
    %991 = vmatprep.subr.bf16.mxu0 0
    %992 = vmatpush1.bf16.msra.mxu0 0
    %993 = vmatprep.subr.bf16.mxu0 0
    %994 = vmatpush1.bf16.msra.mxu0 0
    %995 = vmatprep.subr.bf16.mxu0 0
    %996 = vmatpush1.bf16.msra.mxu0 0
    %997 = vmatprep.subr.bf16.mxu0 0
    %998 = vmatpush1.bf16.msra.mxu0 0
    %999 = vmatprep.subr.bf16.mxu0 0
    %1000 = vmatpush1.bf16.msra.mxu0 0
    %1001 = vmatprep.subr.bf16.mxu0 0
    %1002 = vmatpush1.bf16.msra.mxu0 0
    %1003 = vmatprep.subr.bf16.mxu0 0
    %1004 = vmatpush1.bf16.msra.mxu0 0
    %1005 = vmatprep.subr.bf16.mxu0 0
    %1006 = vmatpush1.bf16.msra.mxu0 0
    %1007 = vmatprep.subr.bf16.mxu0 0
    %1008 = vmatpush1.bf16.msra.mxu0 0
    %1009 = vmatprep.subr.bf16.mxu0 0
    %1010 = vmatpush1.bf16.msra.mxu0 0
    %1011 = vmatprep.subr.bf16.mxu0 0
    %1012 = vmatpush1.bf16.msra.mxu0 0
    %1013 = vmatprep.subr.bf16.mxu0 0
    %1014 = vmatpush1.bf16.msra.mxu0 0
    %1015 = vmatprep.subr.bf16.mxu0 0
    %1016 = vmatpush1.bf16.msra.mxu0 0
    %1017 = vmatprep.subr.bf16.mxu0 0
    %1018 = vmatpush1.bf16.msra.mxu0 0
    %1019 = vmatprep.mubr.bf16.mxu0 0
    %1020 = vmatmul.mubr.bf16.gmra.mrb[0].mxu0 %v932
    %v1021 = vpop.f32.mrb[0].mxu0
    %v1022 = vadd.f32 0.0, %v1021
    %v1023 = vpop.f32.mrb[0].mxu0
    %v1024 = vadd.f32 0.0, %v1023
    %v1025 = vpop.f32.mrb[0].mxu0
    %v1026 = vpop.f32.mrb[0].mxu0
    %1027 = vdwg.mxu0
    %v1028 = vadd.f32 %v888, %v981
    %v1029 = vadd.f32 %v889, %v983
    %v1030 = vadd.f32 %v890, %v1022
    %v1031 = vadd.f32 %v891, %v1024
    %1032 = vrot.lane.b32.xlu0 %v222, 113
    %v1033 = vpop.permute.xlu0 %1032
    %1034 = vrot.lane.b32.xlu0 %v223, 113
    %v1035 = vpop.permute.xlu0 %1034
    %1036 = vrot.lane.b32.xlu0 %v224, 113
    %v1037 = vpop.permute.xlu0 %1036
    %1038 = vrot.lane.b32.xlu0 %v225, 113
    %v1039 = vpop.permute.xlu0 %1038
    %vm1040 = vcmp.lt.s32.totalorder %v245, 113
    %v1041 = vsel %vm1040, %v1037, %v1039
    %v1042 = vsel %vm1040, %v1035, %v1037
    %v1043 = vsel %vm1040, %v1033, %v1035
    %v1044 = vsel %vm1040, %v1039, %v1033
    %v1045 = vlaneseq
    %v1046 = vshrl.u32 %v1045, 7
    %v1047 = vsub.s32 5, %v1046
    %v1048 = vrot.slane %v226, %v1047
    %v1049 = vlaneseq
    %v1050 = vshrl.u32 %v1049, 7
    %v1051 = vsub.s32 5, %v1050
    %v1052 = vrot.slane %v227, %v1051
    %v1053 = vlaneseq
    %v1054 = vshrl.u32 %v1053, 7
    %v1055 = vsub.s32 5, %v1054
    %v1056 = vrot.slane %v228, %v1055
    %v1057 = vlaneseq
    %v1058 = vshrl.u32 %v1057, 7
    %v1059 = vsub.s32 5, %v1058
    %v1060 = vrot.slane %v229, %v1059
    %v1061 = vmul.f32 %v1043, %v1048
    %v1062 = vmul.f32 %v1042, %v1052
    %v1063 = vmul.f32 %v1041, %v1056
    %v1064 = vmul.f32 %v1044, %v1060
    %s1065 = scalar_lea.vmem [#allocation10], 12
    %v1066 = vld [vmem:[%s1065] sm:$0x3]
    %v1067 = vpack.c.bf16 %v1061, %v1061
    %v1068 = vpack.c.bf16 %v1062, %v1062
    %v1069 = vpack.c.bf16 %v1063, %v1063
    %v1070 = vpack.c.bf16 %v1064, %v1064
    %v1072 = vsel %vm276, %v1066, 0
    %v1075 = vsel %vm280, %v1067, 0
    %v1078 = vsel %vm280, %v1068, 0
    %v1081 = vsel %vm280, %v1069, 0
    %v1084 = vsel %vm280, %v1070, 0
    %1086 = vmatprep.subr.bf16.mxu0 %v1078
    %1087 = vmatpush1.bf16.msra.mxu0 %v1075
    %1088 = vmatprep.subr.bf16.mxu0 0
    %1089 = vmatpush1.bf16.msra.mxu0 0
    %1090 = vmatprep.subr.bf16.mxu0 0
    %1091 = vmatpush1.bf16.msra.mxu0 0
    %1092 = vmatprep.subr.bf16.mxu0 0
    %1093 = vmatpush1.bf16.msra.mxu0 0
    %1094 = vmatprep.subr.bf16.mxu0 0
    %1095 = vmatpush1.bf16.msra.mxu0 0
    %1096 = vmatprep.subr.bf16.mxu0 0
    %1097 = vmatpush1.bf16.msra.mxu0 0
    %1098 = vmatprep.subr.bf16.mxu0 0
    %1099 = vmatpush1.bf16.msra.mxu0 0
    %1100 = vmatprep.subr.bf16.mxu0 0
    %1101 = vmatpush1.bf16.msra.mxu0 0
    %1102 = vmatprep.subr.bf16.mxu0 0
    %1103 = vmatpush1.bf16.msra.mxu0 0
    %1104 = vmatprep.subr.bf16.mxu0 0
    %1105 = vmatpush1.bf16.msra.mxu0 0
    %1106 = vmatprep.subr.bf16.mxu0 0
    %1107 = vmatpush1.bf16.msra.mxu0 0
    %1108 = vmatprep.subr.bf16.mxu0 0
    %1109 = vmatpush1.bf16.msra.mxu0 0
    %1110 = vmatprep.subr.bf16.mxu0 0
    %1111 = vmatpush1.bf16.msra.mxu0 0
    %1112 = vmatprep.subr.bf16.mxu0 0
    %1113 = vmatpush1.bf16.msra.mxu0 0
    %1114 = vmatprep.subr.bf16.mxu0 0
    %1115 = vmatpush1.bf16.msra.mxu0 0
    %1116 = vmatprep.subr.bf16.mxu0 0
    %1117 = vmatpush1.bf16.msra.mxu0 0
    %1118 = vmatprep.mubr.bf16.mxu0 0
    %1119 = vmatmul.mubr.bf16.gmra.mrb[0].mxu0 %v1072
    %v1120 = vpop.f32.mrb[0].mxu0
    %v1121 = vadd.f32 0.0, %v1120
    %v1122 = vpop.f32.mrb[0].mxu0
    %v1123 = vadd.f32 0.0, %v1122
    %v1124 = vpop.f32.mrb[0].mxu0
    %v1125 = vpop.f32.mrb[0].mxu0
    %1126 = vdwg.mxu0
    %1127 = vmatprep.subr.bf16.mxu0 %v1084
    %1128 = vmatpush1.bf16.msra.mxu0 %v1081
    %1129 = vmatprep.subr.bf16.mxu0 0
    %1130 = vmatpush1.bf16.msra.mxu0 0
    %1131 = vmatprep.subr.bf16.mxu0 0
    %1132 = vmatpush1.bf16.msra.mxu0 0
    %1133 = vmatprep.subr.bf16.mxu0 0
    %1134 = vmatpush1.bf16.msra.mxu0 0
    %1135 = vmatprep.subr.bf16.mxu0 0
    %1136 = vmatpush1.bf16.msra.mxu0 0
    %1137 = vmatprep.subr.bf16.mxu0 0
    %1138 = vmatpush1.bf16.msra.mxu0 0
    %1139 = vmatprep.subr.bf16.mxu0 0
    %1140 = vmatpush1.bf16.msra.mxu0 0
    %1141 = vmatprep.subr.bf16.mxu0 0
    %1142 = vmatpush1.bf16.msra.mxu0 0
    %1143 = vmatprep.subr.bf16.mxu0 0
    %1144 = vmatpush1.bf16.msra.mxu0 0
    %1145 = vmatprep.subr.bf16.mxu0 0
    %1146 = vmatpush1.bf16.msra.mxu0 0
    %1147 = vmatprep.subr.bf16.mxu0 0
    %1148 = vmatpush1.bf16.msra.mxu0 0
    %1149 = vmatprep.subr.bf16.mxu0 0
    %1150 = vmatpush1.bf16.msra.mxu0 0
    %1151 = vmatprep.subr.bf16.mxu0 0
    %1152 = vmatpush1.bf16.msra.mxu0 0
    %1153 = vmatprep.subr.bf16.mxu0 0
    %1154 = vmatpush1.bf16.msra.mxu0 0
    %1155 = vmatprep.subr.bf16.mxu0 0
    %1156 = vmatpush1.bf16.msra.mxu0 0
    %1157 = vmatprep.subr.bf16.mxu0 0
    %1158 = vmatpush1.bf16.msra.mxu0 0
    %1159 = vmatprep.mubr.bf16.mxu0 0
    %1160 = vmatmul.mubr.bf16.gmra.mrb[0].mxu0 %v1072
    %v1161 = vpop.f32.mrb[0].mxu0
    %v1162 = vadd.f32 0.0, %v1161
    %v1163 = vpop.f32.mrb[0].mxu0
    %v1164 = vadd.f32 0.0, %v1163
    %v1165 = vpop.f32.mrb[0].mxu0
    %v1166 = vpop.f32.mrb[0].mxu0
    %1167 = vdwg.mxu0
    %v1168 = vadd.f32 %v1028, %v1121
    %v1169 = vadd.f32 %v1029, %v1123
    %v1170 = vadd.f32 %v1030, %v1162
    %v1171 = vadd.f32 %v1031, %v1164
    %1172 = vrot.lane.b32.xlu0 %v222, 112
    %v1173 = vpop.permute.xlu0 %1172
    %1174 = vrot.lane.b32.xlu0 %v223, 112
    %v1175 = vpop.permute.xlu0 %1174
    %1176 = vrot.lane.b32.xlu0 %v224, 112
    %v1177 = vpop.permute.xlu0 %1176
    %1178 = vrot.lane.b32.xlu0 %v225, 112
    %v1179 = vpop.permute.xlu0 %1178
    %vm1180 = vcmp.lt.s32.totalorder %v245, 112
    %v1181 = vsel %vm1180, %v1177, %v1179
    %v1182 = vsel %vm1180, %v1175, %v1177
    %v1183 = vsel %vm1180, %v1173, %v1175
    %v1184 = vsel %vm1180, %v1179, %v1173
    %v1185 = vlaneseq
    %v1186 = vshrl.u32 %v1185, 7
    %v1187 = vsub.s32 6, %v1186
    %v1188 = vrot.slane %v226, %v1187
    %v1189 = vlaneseq
    %v1190 = vshrl.u32 %v1189, 7
    %v1191 = vsub.s32 6, %v1190
    %v1192 = vrot.slane %v227, %v1191
    %v1193 = vlaneseq
    %v1194 = vshrl.u32 %v1193, 7
    %v1195 = vsub.s32 6, %v1194
    %v1196 = vrot.slane %v228, %v1195
    %v1197 = vlaneseq
    %v1198 = vshrl.u32 %v1197, 7
    %v1199 = vsub.s32 6, %v1198
    %v1200 = vrot.slane %v229, %v1199
    %v1201 = vmul.f32 %v1183, %v1188
    %v1202 = vmul.f32 %v1182, %v1192
    %v1203 = vmul.f32 %v1181, %v1196
    %v1204 = vmul.f32 %v1184, %v1200
    %s1205 = scalar_lea.vmem [#allocation10], 14
    %v1206 = vld [vmem:[%s1205] sm:$0x3]
    %v1207 = vpack.c.bf16 %v1201, %v1201
    %v1208 = vpack.c.bf16 %v1202, %v1202
    %v1209 = vpack.c.bf16 %v1203, %v1203
    %v1210 = vpack.c.bf16 %v1204, %v1204
    %v1212 = vsel %vm276, %v1206, 0
    %v1215 = vsel %vm280, %v1207, 0
    %v1218 = vsel %vm280, %v1208, 0
    %v1221 = vsel %vm280, %v1209, 0
    %v1224 = vsel %vm280, %v1210, 0
    %1226 = vmatprep.subr.bf16.mxu0 %v1218
    %1227 = vmatpush1.bf16.msra.mxu0 %v1215
    %1228 = vmatprep.subr.bf16.mxu0 0
    %1229 = vmatpush1.bf16.msra.mxu0 0
    %1230 = vmatprep.subr.bf16.mxu0 0
    %1231 = vmatpush1.bf16.msra.mxu0 0
    %1232 = vmatprep.subr.bf16.mxu0 0
    %1233 = vmatpush1.bf16.msra.mxu0 0
    %1234 = vmatprep.subr.bf16.mxu0 0
    %1235 = vmatpush1.bf16.msra.mxu0 0
    %1236 = vmatprep.subr.bf16.mxu0 0
    %1237 = vmatpush1.bf16.msra.mxu0 0
    %1238 = vmatprep.subr.bf16.mxu0 0
    %1239 = vmatpush1.bf16.msra.mxu0 0
    %1240 = vmatprep.subr.bf16.mxu0 0
    %1241 = vmatpush1.bf16.msra.mxu0 0
    %1242 = vmatprep.subr.bf16.mxu0 0
    %1243 = vmatpush1.bf16.msra.mxu0 0
    %1244 = vmatprep.subr.bf16.mxu0 0
    %1245 = vmatpush1.bf16.msra.mxu0 0
    %1246 = vmatprep.subr.bf16.mxu0 0
    %1247 = vmatpush1.bf16.msra.mxu0 0
    %1248 = vmatprep.subr.bf16.mxu0 0
    %1249 = vmatpush1.bf16.msra.mxu0 0
    %1250 = vmatprep.subr.bf16.mxu0 0
    %1251 = vmatpush1.bf16.msra.mxu0 0
    %1252 = vmatprep.subr.bf16.mxu0 0
    %1253 = vmatpush1.bf16.msra.mxu0 0
    %1254 = vmatprep.subr.bf16.mxu0 0
    %1255 = vmatpush1.bf16.msra.mxu0 0
    %1256 = vmatprep.subr.bf16.mxu0 0
    %1257 = vmatpush1.bf16.msra.mxu0 0
    %1258 = vmatprep.mubr.bf16.mxu0 0
    %1259 = vmatmul.mubr.bf16.gmra.mrb[0].mxu0 %v1212
    %v1260 = vpop.f32.mrb[0].mxu0
    %v1261 = vadd.f32 0.0, %v1260
    %v1262 = vpop.f32.mrb[0].mxu0
    %v1263 = vadd.f32 0.0, %v1262
    %v1264 = vpop.f32.mrb[0].mxu0
    %v1265 = vpop.f32.mrb[0].mxu0
    %1266 = vdwg.mxu0
    %1267 = vmatprep.subr.bf16.mxu0 %v1224
    %1268 = vmatpush1.bf16.msra.mxu0 %v1221
    %1269 = vmatprep.subr.bf16.mxu0 0
    %1270 = vmatpush1.bf16.msra.mxu0 0
    %1271 = vmatprep.subr.bf16.mxu0 0
    %1272 = vmatpush1.bf16.msra.mxu0 0
    %1273 = vmatprep.subr.bf16.mxu0 0
    %1274 = vmatpush1.bf16.msra.mxu0 0
    %1275 = vmatprep.subr.bf16.mxu0 0
    %1276 = vmatpush1.bf16.msra.mxu0 0
    %1277 = vmatprep.subr.bf16.mxu0 0
    %1278 = vmatpush1.bf16.msra.mxu0 0
    %1279 = vmatprep.subr.bf16.mxu0 0
    %1280 = vmatpush1.bf16.msra.mxu0 0
    %1281 = vmatprep.subr.bf16.mxu0 0
    %1282 = vmatpush1.bf16.msra.mxu0 0
    %1283 = vmatprep.subr.bf16.mxu0 0
    %1284 = vmatpush1.bf16.msra.mxu0 0
    %1285 = vmatprep.subr.bf16.mxu0 0
    %1286 = vmatpush1.bf16.msra.mxu0 0
    %1287 = vmatprep.subr.bf16.mxu0 0
    %1288 = vmatpush1.bf16.msra.mxu0 0
    %1289 = vmatprep.subr.bf16.mxu0 0
    %1290 = vmatpush1.bf16.msra.mxu0 0
    %1291 = vmatprep.subr.bf16.mxu0 0
    %1292 = vmatpush1.bf16.msra.mxu0 0
    %1293 = vmatprep.subr.bf16.mxu0 0
    %1294 = vmatpush1.bf16.msra.mxu0 0
    %1295 = vmatprep.subr.bf16.mxu0 0
    %1296 = vmatpush1.bf16.msra.mxu0 0
    %1297 = vmatprep.subr.bf16.mxu0 0
    %1298 = vmatpush1.bf16.msra.mxu0 0
    %1299 = vmatprep.mubr.bf16.mxu0 0
    %1300 = vmatmul.mubr.bf16.gmra.mrb[0].mxu0 %v1212
    %v1301 = vpop.f32.mrb[0].mxu0
    %v1302 = vadd.f32 0.0, %v1301
    %v1303 = vpop.f32.mrb[0].mxu0
    %v1304 = vadd.f32 0.0, %v1303
    %v1305 = vpop.f32.mrb[0].mxu0
    %v1306 = vpop.f32.mrb[0].mxu0
    %1307 = vdwg.mxu0
    %v1308 = vadd.f32 %v1168, %v1261
    %v1309 = vadd.f32 %v1169, %v1263
    %v1310 = vadd.f32 %v1170, %v1302
    %v1311 = vadd.f32 %v1171, %v1304
    %1312 = vrot.lane.b32.xlu0 %v222, 111
    %v1313 = vpop.permute.xlu0 %1312
    %1314 = vrot.lane.b32.xlu0 %v223, 111
    %v1315 = vpop.permute.xlu0 %1314
    %1316 = vrot.lane.b32.xlu0 %v224, 111
    %v1317 = vpop.permute.xlu0 %1316
    %1318 = vrot.lane.b32.xlu0 %v225, 111
    %v1319 = vpop.permute.xlu0 %1318
    %vm1320 = vcmp.lt.s32.totalorder %v245, 111
    %v1321 = vsel %vm1320, %v1317, %v1319
    %v1322 = vsel %vm1320, %v1315, %v1317
    %v1323 = vsel %vm1320, %v1313, %v1315
    %v1324 = vsel %vm1320, %v1319, %v1313
    %v1325 = vlaneseq
    %v1326 = vshrl.u32 %v1325, 7
    %v1327 = vsub.s32 7, %v1326
    %v1328 = vrot.slane %v226, %v1327
    %v1329 = vlaneseq
    %v1330 = vshrl.u32 %v1329, 7
    %v1331 = vsub.s32 7, %v1330
    %v1332 = vrot.slane %v227, %v1331
    %v1333 = vlaneseq
    %v1334 = vshrl.u32 %v1333, 7
    %v1335 = vsub.s32 7, %v1334
    %v1336 = vrot.slane %v228, %v1335
    %v1337 = vlaneseq
    %v1338 = vshrl.u32 %v1337, 7
    %v1339 = vsub.s32 7, %v1338
    %v1340 = vrot.slane %v229, %v1339
    %v1341 = vmul.f32 %v1323, %v1328
    %v1342 = vmul.f32 %v1322, %v1332
    %v1343 = vmul.f32 %v1321, %v1336
    %v1344 = vmul.f32 %v1324, %v1340
    %s1345 = scalar_lea.vmem [#allocation10], 16
    %v1346 = vld [vmem:[%s1345] sm:$0x3]
    %v1347 = vpack.c.bf16 %v1341, %v1341
    %v1348 = vpack.c.bf16 %v1342, %v1342
    %v1349 = vpack.c.bf16 %v1343, %v1343
    %v1350 = vpack.c.bf16 %v1344, %v1344
    %v1352 = vsel %vm276, %v1346, 0
    %v1355 = vsel %vm280, %v1347, 0
    %v1358 = vsel %vm280, %v1348, 0
    %v1361 = vsel %vm280, %v1349, 0
    %v1364 = vsel %vm280, %v1350, 0
    %1366 = vmatprep.subr.bf16.mxu0 %v1358
    %1367 = vmatpush1.bf16.msra.mxu0 %v1355
    %1368 = vmatprep.subr.bf16.mxu0 0
    %1369 = vmatpush1.bf16.msra.mxu0 0
    %1370 = vmatprep.subr.bf16.mxu0 0
    %1371 = vmatpush1.bf16.msra.mxu0 0
    %1372 = vmatprep.subr.bf16.mxu0 0
    %1373 = vmatpush1.bf16.msra.mxu0 0
    %1374 = vmatprep.subr.bf16.mxu0 0
    %1375 = vmatpush1.bf16.msra.mxu0 0
    %1376 = vmatprep.subr.bf16.mxu0 0
    %1377 = vmatpush1.bf16.msra.mxu0 0
    %1378 = vmatprep.subr.bf16.mxu0 0
    %1379 = vmatpush1.bf16.msra.mxu0 0
    %1380 = vmatprep.subr.bf16.mxu0 0
    %1381 = vmatpush1.bf16.msra.mxu0 0
    %1382 = vmatprep.subr.bf16.mxu0 0
    %1383 = vmatpush1.bf16.msra.mxu0 0
    %1384 = vmatprep.subr.bf16.mxu0 0
    %1385 = vmatpush1.bf16.msra.mxu0 0
    %1386 = vmatprep.subr.bf16.mxu0 0
    %1387 = vmatpush1.bf16.msra.mxu0 0
    %1388 = vmatprep.subr.bf16.mxu0 0
    %1389 = vmatpush1.bf16.msra.mxu0 0
    %1390 = vmatprep.subr.bf16.mxu0 0
    %1391 = vmatpush1.bf16.msra.mxu0 0
    %1392 = vmatprep.subr.bf16.mxu0 0
    %1393 = vmatpush1.bf16.msra.mxu0 0
    %1394 = vmatprep.subr.bf16.mxu0 0
    %1395 = vmatpush1.bf16.msra.mxu0 0
    %1396 = vmatprep.subr.bf16.mxu0 0
    %1397 = vmatpush1.bf16.msra.mxu0 0
    %1398 = vmatprep.mubr.bf16.mxu0 0
    %1399 = vmatmul.mubr.bf16.gmra.mrb[0].mxu0 %v1352
    %v1400 = vpop.f32.mrb[0].mxu0
    %v1401 = vadd.f32 0.0, %v1400
    %v1402 = vpop.f32.mrb[0].mxu0
    %v1403 = vadd.f32 0.0, %v1402
    %v1404 = vpop.f32.mrb[0].mxu0
    %v1405 = vpop.f32.mrb[0].mxu0
    %1406 = vdwg.mxu0
    %1407 = vmatprep.subr.bf16.mxu0 %v1364
    %1408 = vmatpush1.bf16.msra.mxu0 %v1361
    %1409 = vmatprep.subr.bf16.mxu0 0
    %1410 = vmatpush1.bf16.msra.mxu0 0
    %1411 = vmatprep.subr.bf16.mxu0 0
    %1412 = vmatpush1.bf16.msra.mxu0 0
    %1413 = vmatprep.subr.bf16.mxu0 0
    %1414 = vmatpush1.bf16.msra.mxu0 0
    %1415 = vmatprep.subr.bf16.mxu0 0
    %1416 = vmatpush1.bf16.msra.mxu0 0
    %1417 = vmatprep.subr.bf16.mxu0 0
    %1418 = vmatpush1.bf16.msra.mxu0 0
    %1419 = vmatprep.subr.bf16.mxu0 0
    %1420 = vmatpush1.bf16.msra.mxu0 0
    %1421 = vmatprep.subr.bf16.mxu0 0
    %1422 = vmatpush1.bf16.msra.mxu0 0
    %1423 = vmatprep.subr.bf16.mxu0 0
    %1424 = vmatpush1.bf16.msra.mxu0 0
    %1425 = vmatprep.subr.bf16.mxu0 0
    %1426 = vmatpush1.bf16.msra.mxu0 0
    %1427 = vmatprep.subr.bf16.mxu0 0
    %1428 = vmatpush1.bf16.msra.mxu0 0
    %1429 = vmatprep.subr.bf16.mxu0 0
    %1430 = vmatpush1.bf16.msra.mxu0 0
    %1431 = vmatprep.subr.bf16.mxu0 0
    %1432 = vmatpush1.bf16.msra.mxu0 0
    %1433 = vmatprep.subr.bf16.mxu0 0
    %1434 = vmatpush1.bf16.msra.mxu0 0
    %1435 = vmatprep.subr.bf16.mxu0 0
    %1436 = vmatpush1.bf16.msra.mxu0 0
    %1437 = vmatprep.subr.bf16.mxu0 0
    %1438 = vmatpush1.bf16.msra.mxu0 0
    %1439 = vmatprep.mubr.bf16.mxu0 0
    %1440 = vmatmul.mubr.bf16.gmra.mrb[0].mxu0 %v1352
    %v1441 = vpop.f32.mrb[0].mxu0
    %v1442 = vadd.f32 0.0, %v1441
    %v1443 = vpop.f32.mrb[0].mxu0
    %v1444 = vadd.f32 0.0, %v1443
    %v1445 = vpop.f32.mrb[0].mxu0
    %v1446 = vpop.f32.mrb[0].mxu0
    %1447 = vdwg.mxu0
    %v1448 = vadd.f32 %v1308, %v1401
    %v1449 = vadd.f32 %v1309, %v1403
    %v1450 = vadd.f32 %v1310, %v1442
    %v1451 = vadd.f32 %v1311, %v1444
    %v1452 = vld [vmem:[#allocation11] sm:$0xf]
    %1454 = vset.pattern.permute.xlu0 0
    %1455 = vperm.xlu0 %1454, %v1452
    %v1456 = vpop.permute.xlu0 %1455
    %v1458 = vadd.f32 %v1448, %v1456
    %v1459 = vadd.f32 %v1449, %v1456
    %v1460 = vadd.f32 %v1450, %v1456
    %v1461 = vadd.f32 %v1451, %v1456
    %v1462 = vmul.f32 %v1458, 0.1
    %v1463 = vmul.f32 %v1459, 0.1
    %v1464 = vmul.f32 %v1460, 0.1
    %v1465 = vmul.f32 %v1461, 0.1
    %v1466 = vmax.f32 %v1458, %v1462
    %v1467 = vmax.f32 %v1459, %v1463
    %v1468 = vmax.f32 %v1460, %v1464
    %v1469 = vmax.f32 %v1461, %v1465
    %v1470 = vadd.f32 %v1466, %v99
    %v1471 = vadd.f32 %v1467, %v103
    %v1472 = vadd.f32 %v1468, %v101
    %v1473 = vadd.f32 %v1469, %v106
    %v1476 = vcombine.low %v1470, %v1471
    %1478 = vst [vmem:[#allocation13] sm:$0xff] %v1476
    %v1481 = vcombine.low %v1472, %v1473
    %s1483 = scalar_lea.vmem [#allocation13], 8
    %1484 = vst [vmem:[%s1483] sm:$0xff] %v1481
    // Predicated region
    $region50: #{tpu_custom_call.1} parent=1 // pred_check
      _
    $region51: #{tpu_custom_call.1} parent=1 // pred_check_branch
      %1486 = sbr.rel (0) target = $region53
    $region52: #{tpu_custom_call.1} parent=1 // pred_region
      %s1488 = ssub.s32 256, 256
      %1489 = vsyncadd [#allocation4], %s1488
      %s1490 = sshll.u32 [#allocation13], 4
      %s1491 = int_to_ptr.vmem [resolvable:$true] %s1490
      %1496 = dma.vmem_to_hbm [thread:$0]  %s1491, 256, %s6, [#allocation4], 128, 128, 8
    $region53: #{tpu_custom_call.1} parent=1 // pred_fallthru
      _
    // Predicated region
    $region54: #{tpu_custom_call.1} parent=1 // pred_check
      _
    $region55: #{tpu_custom_call.1} parent=1 // pred_check_branch
      %1498 = sbr.rel (0) target = $region57
    $region56: #{tpu_custom_call.1} parent=1 // pred_region
      %1499 = dma.done [#allocation4], 256
    $region57: #{tpu_custom_call.1} parent=1 // pred_fallthru
      _
    %1500 = vsyncpa [#allocation3], 1
    %1501 = vsyncpa [#allocation6], 1
    %1502 = vsyncpa [#allocation9], 1
    %1503 = vsyncpa [#allocation12], 1
    %1504 = vsyncpa [#allocation4], 1

</llo_original>
